<compile_context>
chip_gen: v5e
topology: v5e:2x2
jax: 0.10.0
libtpu: 0.0.40
codegen_flags: <defaults>
</compile_context>

<pallas_src>
from functools import partial
from typing import NamedTuple

import jax
import jax.numpy as jnp
from jax.experimental import pallas as pl
from jax.experimental.pallas import tpu as pltpu


class CNNConfig(NamedTuple):
    cin: int
    c1: int
    c2: int
    n_pos2: int      # conv2 output spatial positions (Ho2*Wo2) == fc1_in / c2
    d_fc1: int
    num_classes: int
    k_pad: int       # conv1 GEMM K (9*cin) zero-padded to this
    ncls_pad: int    # fc2 output lane-padded to this (lane-dense final store)
    stride1: int
    stride2: int


# ---------------------------------------------------------------------------
# Fused Pallas kernel: conv1 -> LReLU -> conv2 -> LReLU -> fc1 -> LReLU -> fc2
# ---------------------------------------------------------------------------
def _cnn_fused_kernel(cols1g_ref, w1_ref, w2_ref, wfc1_ref, bfc1_ref,
                      wfc2_ref, bfc2_ref, out_ref, t_scr, y2_scr,
                      *, n_batch, c1, c2, n_pos2, d_fc1, neg_slope):
    rows_per_tap = n_pos2 * n_batch   # one conv2-output row per (spatial pos, sample)

    def leaky(v):
        return jnp.where(v >= 0.0, v, neg_slope * v)

    # conv1: one GEMM over all 9 conv2-tap-gathered row blocks (K zero-padded to 128).
    # Rows where conv2 reads conv1's spatial zero padding are all-zero in cols1g, so
    # LeakyReLU(0 @ w1) = 0 reproduces the padded activation exactly (conv has no bias).
    t = jnp.dot(cols1g_ref[...], w1_ref[...], preferred_element_type=jnp.float32)
    t_scr[...] = leaky(t)                                   # (9*rows_per_tap, c1)

    # conv2: accumulate the 9 tap matmuls (static, sublane-tile-aligned ref slices).
    acc2 = jnp.zeros((rows_per_tap, c2), jnp.float32)
    for k in range(9):
        tk = t_scr[k * rows_per_tap:(k + 1) * rows_per_tap, :]   # (rows_per_tap, c1)
        wk = w2_ref[k * c1:(k + 1) * c1, :]                      # (c1, c2)
        acc2 = acc2 + jnp.dot(tk, wk, preferred_element_type=jnp.float32)
    y2_scr[...] = leaky(acc2)          # rows ordered (spatial p major, sample n minor)

    # fc1: contraction over (spatial position, channel).  fc1 weights were pre-permuted
    # into spatial-major (c2, d_fc1) blocks, so each term is an aligned ref slice.
    h = jnp.zeros((n_batch, d_fc1), jnp.float32)
    for p in range(n_pos2):
        yp = y2_scr[p * n_batch:(p + 1) * n_batch, :]            # (n_batch, c2)
        wp = wfc1_ref[p * c2:(p + 1) * c2, :]                    # (c2, d_fc1)
        h = h + jnp.dot(yp, wp, preferred_element_type=jnp.float32)
    h = leaky(h + bfc1_ref[...])

    # TODO(synk): Dropout(p=0.2) treated as identity (inference / eval semantics).

    # fc2 (+ bias); output lane-padded to 128 so the final store is lane-dense.
    out = jnp.dot(h, wfc2_ref[...], preferred_element_type=jnp.float32) + bfc2_ref[...]
    out_ref[...] = out.astype(out_ref.dtype)


# ---------------------------------------------------------------------------
# One-time parameter re-layout (pre-baked transposes / permutations / padding)
# ---------------------------------------------------------------------------
def prepare_params(conv_weights, fc1_w, fc1_b, fc2_w, fc2_b, num_classes, strides,
                   k_pad=128, ncls_pad=128):
    assert len(conv_weights) == 2, "fused kernel assumes the 2-block CNN_Baseline config"
    w1, w2 = conv_weights
    c1, cin = w1.shape[0], w1.shape[1]
    c2 = w2.shape[0]
    d_fc1, fc1_in = fc1_w.shape
    assert fc1_in % c2 == 0
    n_pos2 = fc1_in // c2
    assert 9 * cin <= k_pad and num_classes <= ncls_pad

    # conv1 weight (c1, cin, 3, 3) -> (9*cin, c1), K-order (kh, kw, cin), padded to k_pad.
    w1_mat = jnp.transpose(w1, (2, 3, 1, 0)).reshape(9 * cin, c1)
    w1_p = jnp.pad(w1_mat, ((0, k_pad - 9 * cin), (0, 0)))

    # conv2 weight (c2, c1, 3, 3) -> 9 stacked (c1, c2) tap blocks (tap-major rows).
    w2_mat = jnp.transpose(w2, (2, 3, 1, 0)).reshape(9 * c1, c2)

    # fc1 weight (d_fc1, c2*n_pos2) has PyTorch NCHW-flatten column order (channel-major).
    # Re-lay it to spatial-major (n_pos2*c2, d_fc1) blocks matching the kernel's conv2
    # output row layout (kills the per-forward NHWC->NCHW transpose).
    wfc1_r = jnp.transpose(fc1_w.reshape(d_fc1, c2, n_pos2),
                           (2, 1, 0)).reshape(n_pos2 * c2, d_fc1)
    bfc1_r = fc1_b.reshape(1, d_fc1)

    # fc2: pre-transpose and lane-pad the output dim.
    wfc2_p = jnp.pad(fc2_w.T, ((0, 0), (0, ncls_pad - num_classes)))
    bfc2_p = jnp.pad(fc2_b, (0, ncls_pad - num_classes)).reshape(1, ncls_pad)

    arrs = dict(w1_p=w1_p, w2_mat=w2_mat, wfc1_r=wfc1_r, bfc1_r=bfc1_r,
                wfc2_p=wfc2_p, bfc2_p=bfc2_p)
    cfg = CNNConfig(cin=cin, c1=c1, c2=c2, n_pos2=n_pos2, d_fc1=d_fc1,
                    num_classes=num_classes, k_pad=k_pad, ncls_pad=ncls_pad,
                    stride1=strides[0], stride2=strides[1])
    return arrs, cfg


# ---------------------------------------------------------------------------
# Per-forward input prep: conv1 im2col rows gathered in conv2-tap order
# ---------------------------------------------------------------------------
def _build_cols1g(x_nchw, cfg):
    """Single fused XLA gather on the raw input (~40 KB).  Row r of tap block k2
    corresponds to conv2 output position p = oh2*Wo2 + ow2 (major) and sample n (minor);
    all-zero rows encode conv2 reading conv1's spatial zero padding.  K order is
    (kh1, kw1, cin), zero-padded to cfg.k_pad."""
    N, Cin, H, W = x_nchw.shape
    s1, s2 = cfg.stride1, cfg.stride2
    xh = jnp.transpose(x_nchw, (0, 2, 3, 1))                        # NCHW -> NHWC
    xp = jnp.pad(xh, ((0, 0), (1, 1), (1, 1), (0, 0)))
    Ho1 = (H + 2 - 3) // s1 + 1
    Wo1 = (W + 2 - 3) // s1 + 1
    taps = []
    for kh in range(3):
        for kw in range(3):
            taps.append(xp[:, kh:kh + s1 * Ho1:s1, kw:kw + s1 * Wo1:s1, :])
    cols1 = jnp.stack(taps, axis=3).reshape(N, Ho1, Wo1, 9 * Cin)   # conv1 im2col per pos
    cols1p = jnp.pad(cols1, ((0, 0), (1, 1), (1, 1), (0, 0)))       # conv2 pad=1 -> zero rows
    Ho2 = (Ho1 + 2 - 3) // s2 + 1
    Wo2 = (Wo1 + 2 - 3) // s2 + 1
    assert Ho2 * Wo2 == cfg.n_pos2, "architecture must flatten to fc1's input size"
    blocks = []
    for kh in range(3):
        for kw in range(3):
            g = cols1p[:, kh:kh + s2 * Ho2:s2, kw:kw + s2 * Wo2:s2, :]  # (N, Ho2, Wo2, 9*Cin)
            g = jnp.transpose(g, (1, 2, 0, 3)).reshape(Ho2 * Wo2 * N, 9 * Cin)
            blocks.append(g)
    cols1g = jnp.concatenate(blocks, axis=0)                        # (9*n_pos2*N, 9*Cin)
    return jnp.pad(cols1g, ((0, 0), (0, cfg.k_pad - 9 * Cin)))


# ---------------------------------------------------------------------------
# Full forward (mirrors CNN_Baseline.forward) — one pallas_call
# ---------------------------------------------------------------------------
def cnn_baseline_forward(x_nchw, arrs, cfg):
    n_batch = x_nchw.shape[0]
    cols1g = _build_cols1g(x_nchw, cfg)
    rows_per_tap = cfg.n_pos2 * n_batch
    kernel = partial(_cnn_fused_kernel, n_batch=n_batch, c1=cfg.c1, c2=cfg.c2,
                     n_pos2=cfg.n_pos2, d_fc1=cfg.d_fc1, neg_slope=0.01)
    vmem = pl.BlockSpec(memory_space=pltpu.MemorySpace.VMEM)
    # Whole-array VMEM blocks, no grid — total resident footprint < 0.5 MiB, well under
    # the scoped-VMEM default on every chip.  If batch / resolution is ever scaled up,
    # add a grid over the row dim of cols1g with dimension_semantics=("parallel",) so
    # both v7x TensorCores are used and VMEM stays bounded.
    out_p = pl.pallas_call(
        kernel,
        out_shape=jax.ShapeDtypeStruct((n_batch, cfg.ncls_pad), jnp.float32),
        in_specs=[vmem] * 7,
        out_specs=vmem,
        scratch_shapes=[
            pltpu.VMEM((9 * rows_per_tap, cfg.c1), jnp.float32),  # conv1 activations
            pltpu.VMEM((rows_per_tap, cfg.c2), jnp.float32),      # conv2 activations
        ],
    )(cols1g, arrs["w1_p"], arrs["w2_mat"], arrs["wfc1_r"], arrs["bfc1_r"],
      arrs["wfc2_p"], arrs["bfc2_p"])
    return out_p[:, :cfg.num_classes]


# ---------------------------------------------------------------------------
# Pure-JAX reference (independent of the kernel's im2col logic)
# ---------------------------------------------------------------------------
def _reference_forward(x, conv_weights, strides, fc1_w, fc1_b, fc2_w, fc2_b):
    hi = jax.lax.Precision.HIGHEST
    y = x
    for w, s in zip(conv_weights, strides):
        y = jax.lax.conv_general_dilated(
            y, w, window_strides=(s, s), padding=((1, 1), (1, 1)),
            dimension_numbers=("NCHW", "OIHW", "NCHW"), precision=hi)
        y = jnp.where(y >= 0.0, y, 0.01 * y)
    feat = y.reshape(y.shape[0], -1)
    h = jnp.dot(feat, fc1_w.T, precision=hi) + fc1_b
    h = jnp.where(h >= 0.0, h, 0.01 * h)
    return jnp.dot(h, fc2_w.T, precision=hi) + fc2_b


# ---------------------------------------------------------------------------
# Main
# ---------------------------------------------------------------------------
if __name__ == "__main__":
    key = jax.random.PRNGKey(0)

    # blocks_list: (in_channels, out_channels, stride) — chosen so the final feature map
    # flattens to 512, matching fc1 = Linear(512, 64):
    # 16x16 --(s=2)--> 8x8 --(s=2)--> 4x4 with 32 ch: 32*4*4 = 512.
    blocks_list = [(4, 16, 2), (16, 32, 2)]
    strides = [b[2] for b in blocks_list]
    num_classes = 4

    keys = jax.random.split(key, 2 + len(blocks_list) + 4)
    k_x = keys[0]

    conv_weights = []
    for i, (cin, cout, _) in enumerate(blocks_list):
        kw = keys[2 + i]
        conv_weights.append(
            jax.random.normal(kw, (cout, cin, 3, 3), jnp.float32)
            * (1.0 / jnp.sqrt(9.0 * cin)))
    fc1_w = jax.random.normal(keys[-4], (64, 512), jnp.float32) * (1.0 / jnp.sqrt(512.0))
    fc1_b = jax.random.normal(keys[-3], (64,), jnp.float32) * 0.01
    fc2_w = jax.random.normal(keys[-2], (num_classes, 64), jnp.float32) * (1.0 / jnp.sqrt(64.0))
    fc2_b = jax.random.normal(keys[-1], (num_classes,), jnp.float32) * 0.01

    # input: NCHW, batch=2, channels=4, spatial=16
    x = jax.random.normal(k_x, (2, 4, 16, 16), jnp.float32)

    # one-time weight re-layout (pre-baked transposes / permutations / padding)
    arrs, cfg = prepare_params(conv_weights, fc1_w, fc1_b, fc2_w, fc2_b,
                               num_classes, strides)

    fwd = jax.jit(lambda xb, ab: cnn_baseline_forward(xb, ab, cfg))
    out = fwd(x, arrs)
    jax.block_until_ready(out)

    assert out.shape == (2, num_classes)
    ref = _reference_forward(x, conv_weights, strides, fc1_w, fc1_b, fc2_w, fc2_b)
    max_err = float(jnp.max(jnp.abs(out - ref)))
    assert max_err < 1e-2, f"kernel/reference mismatch: max_abs_err={max_err}"
    print("KERNEL_OK")
</pallas_src>

<mosaic_0001>
module attributes {stable_mosaic.version = 11 : i64} {
  func.func @_cnn_fused_kernel(%arg0: memref<288x128xf32, #tpu.memory_space<vmem>>, %arg1: memref<128x16xf32, #tpu.memory_space<vmem>>, %arg2: memref<144x32xf32, #tpu.memory_space<vmem>>, %arg3: memref<512x64xf32, #tpu.memory_space<vmem>>, %arg4: memref<1x64xf32, #tpu.memory_space<vmem>>, %arg5: memref<64x128xf32, #tpu.memory_space<vmem>>, %arg6: memref<1x128xf32, #tpu.memory_space<vmem>>, %arg7: memref<2x128xf32, #tpu.memory_space<vmem>>, %arg8: memref<288x16xf32, #tpu.memory_space<vmem>>, %arg9: memref<32x32xf32, #tpu.memory_space<vmem>>) attributes {dimension_semantics = [], scalar_prefetch = 0 : i64, scratch_operands = 2 : i64, tpu.core_type = #tpu.core_type<tc>} {
    %c0 = arith.constant 0 : index
    %c0_0 = arith.constant 0 : index
    %0 = vector.load %arg0[%c0, %c0_0] : memref<288x128xf32, #tpu.memory_space<vmem>>, vector<288x128xf32>
    %c0_1 = arith.constant 0 : index
    %c0_2 = arith.constant 0 : index
    %1 = vector.load %arg1[%c0_1, %c0_2] : memref<128x16xf32, #tpu.memory_space<vmem>>, vector<128x16xf32>
    %cst = arith.constant dense<0.000000e+00> : vector<288x16xf32>
    %2 = tpu.matmul %0, %1, %cst {dimension_numbers = #tpu.dot_dimension_numbers<[1], [0], [0], [1], [0, 0, 1, 1], [], []>} : vector<288x128xf32>, vector<128x16xf32>, vector<288x16xf32> -> vector<288x16xf32>
    %cst_3 = arith.constant 0.000000e+00 : f32
    %3 = vector.broadcast %cst_3 : f32 to vector<288x16xf32>
    %4 = arith.cmpf oge, %2, %3 : vector<288x16xf32>
    %cst_4 = arith.constant 0.00999999977 : f32
    %5 = vector.broadcast %cst_4 : f32 to vector<288x16xf32>
    %6 = arith.mulf %5, %2 : vector<288x16xf32>
    %7 = arith.select %4, %2, %6 : vector<288x16xi1>, vector<288x16xf32>
    %c0_5 = arith.constant 0 : index
    %c0_6 = arith.constant 0 : index
    %8 = vector.load %arg8[%c0_5, %c0_6] : memref<288x16xf32, #tpu.memory_space<vmem>>, vector<288x16xf32>
    tpu.vector_store %arg8[%c0_5, %c0_6], %7 {strides = array<i32>} : memref<288x16xf32, #tpu.memory_space<vmem>>, vector<288x16xf32>,
    %cst_7 = arith.constant 0.000000e+00 : f32
    %9 = vector.broadcast %cst_7 : f32 to vector<32x32xf32>
    %c0_8 = arith.constant 0 : index
    %c0_9 = arith.constant 0 : index
    %10 = vector.load %arg8[%c0_8, %c0_9] : memref<288x16xf32, #tpu.memory_space<vmem>>, vector<32x16xf32>
    %c0_10 = arith.constant 0 : index
    %c0_11 = arith.constant 0 : index
    %11 = vector.load %arg2[%c0_10, %c0_11] : memref<144x32xf32, #tpu.memory_space<vmem>>, vector<16x32xf32>
    %cst_12 = arith.constant dense<0.000000e+00> : vector<32x32xf32>
    %12 = tpu.matmul %10, %11, %cst_12 {dimension_numbers = #tpu.dot_dimension_numbers<[1], [0], [0], [1], [0, 0, 1, 1], [], []>} : vector<32x16xf32>, vector<16x32xf32>, vector<32x32xf32> -> vector<32x32xf32>
    %13 = arith.addf %9, %12 : vector<32x32xf32>
    %c32 = arith.constant 32 : index
    %c0_13 = arith.constant 0 : index
    %14 = vector.load %arg8[%c32, %c0_13] : memref<288x16xf32, #tpu.memory_space<vmem>>, vector<32x16xf32>
    %c16 = arith.constant 16 : index
    %c0_14 = arith.constant 0 : index
    %15 = vector.load %arg2[%c16, %c0_14] : memref<144x32xf32, #tpu.memory_space<vmem>>, vector<16x32xf32>
    %cst_15 = arith.constant dense<0.000000e+00> : vector<32x32xf32>
    %16 = tpu.matmul %14, %15, %cst_15 {dimension_numbers = #tpu.dot_dimension_numbers<[1], [0], [0], [1], [0, 0, 1, 1], [], []>} : vector<32x16xf32>, vector<16x32xf32>, vector<32x32xf32> -> vector<32x32xf32>
    %17 = arith.addf %13, %16 : vector<32x32xf32>
    %c64 = arith.constant 64 : index
    %c0_16 = arith.constant 0 : index
    %18 = vector.load %arg8[%c64, %c0_16] : memref<288x16xf32, #tpu.memory_space<vmem>>, vector<32x16xf32>
    %c32_17 = arith.constant 32 : index
    %c0_18 = arith.constant 0 : index
    %19 = vector.load %arg2[%c32_17, %c0_18] : memref<144x32xf32, #tpu.memory_space<vmem>>, vector<16x32xf32>
    %cst_19 = arith.constant dense<0.000000e+00> : vector<32x32xf32>
    %20 = tpu.matmul %18, %19, %cst_19 {dimension_numbers = #tpu.dot_dimension_numbers<[1], [0], [0], [1], [0, 0, 1, 1], [], []>} : vector<32x16xf32>, vector<16x32xf32>, vector<32x32xf32> -> vector<32x32xf32>
    %21 = arith.addf %17, %20 : vector<32x32xf32>
    %c96 = arith.constant 96 : index
    %c0_20 = arith.constant 0 : index
    %22 = vector.load %arg8[%c96, %c0_20] : memref<288x16xf32, #tpu.memory_space<vmem>>, vector<32x16xf32>
    %c48 = arith.constant 48 : index
    %c0_21 = arith.constant 0 : index
    %23 = vector.load %arg2[%c48, %c0_21] : memref<144x32xf32, #tpu.memory_space<vmem>>, vector<16x32xf32>
    %cst_22 = arith.constant dense<0.000000e+00> : vector<32x32xf32>
    %24 = tpu.matmul %22, %23, %cst_22 {dimension_numbers = #tpu.dot_dimension_numbers<[1], [0], [0], [1], [0, 0, 1, 1], [], []>} : vector<32x16xf32>, vector<16x32xf32>, vector<32x32xf32> -> vector<32x32xf32>
    %25 = arith.addf %21, %24 : vector<32x32xf32>
    %c128 = arith.constant 128 : index
    %c0_23 = arith.constant 0 : index
    %26 = vector.load %arg8[%c128, %c0_23] : memref<288x16xf32, #tpu.memory_space<vmem>>, vector<32x16xf32>
    %c64_24 = arith.constant 64 : index
    %c0_25 = arith.constant 0 : index
    %27 = vector.load %arg2[%c64_24, %c0_25] : memref<144x32xf32, #tpu.memory_space<vmem>>, vector<16x32xf32>
    %cst_26 = arith.constant dense<0.000000e+00> : vector<32x32xf32>
    %28 = tpu.matmul %26, %27, %cst_26 {dimension_numbers = #tpu.dot_dimension_numbers<[1], [0], [0], [1], [0, 0, 1, 1], [], []>} : vector<32x16xf32>, vector<16x32xf32>, vector<32x32xf32> -> vector<32x32xf32>
    %29 = arith.addf %25, %28 : vector<32x32xf32>
    %c160 = arith.constant 160 : index
    %c0_27 = arith.constant 0 : index
    %30 = vector.load %arg8[%c160, %c0_27] : memref<288x16xf32, #tpu.memory_space<vmem>>, vector<32x16xf32>
    %c80 = arith.constant 80 : index
    %c0_28 = arith.constant 0 : index
    %31 = vector.load %arg2[%c80, %c0_28] : memref<144x32xf32, #tpu.memory_space<vmem>>, vector<16x32xf32>
    %cst_29 = arith.constant dense<0.000000e+00> : vector<32x32xf32>
    %32 = tpu.matmul %30, %31, %cst_29 {dimension_numbers = #tpu.dot_dimension_numbers<[1], [0], [0], [1], [0, 0, 1, 1], [], []>} : vector<32x16xf32>, vector<16x32xf32>, vector<32x32xf32> -> vector<32x32xf32>
    %33 = arith.addf %29, %32 : vector<32x32xf32>
    %c192 = arith.constant 192 : index
    %c0_30 = arith.constant 0 : index
    %34 = vector.load %arg8[%c192, %c0_30] : memref<288x16xf32, #tpu.memory_space<vmem>>, vector<32x16xf32>
    %c96_31 = arith.constant 96 : index
    %c0_32 = arith.constant 0 : index
    %35 = vector.load %arg2[%c96_31, %c0_32] : memref<144x32xf32, #tpu.memory_space<vmem>>, vector<16x32xf32>
    %cst_33 = arith.constant dense<0.000000e+00> : vector<32x32xf32>
    %36 = tpu.matmul %34, %35, %cst_33 {dimension_numbers = #tpu.dot_dimension_numbers<[1], [0], [0], [1], [0, 0, 1, 1], [], []>} : vector<32x16xf32>, vector<16x32xf32>, vector<32x32xf32> -> vector<32x32xf32>
    %37 = arith.addf %33, %36 : vector<32x32xf32>
    %c224 = arith.constant 224 : index
    %c0_34 = arith.constant 0 : index
    %38 = vector.load %arg8[%c224, %c0_34] : memref<288x16xf32, #tpu.memory_space<vmem>>, vector<32x16xf32>
    %c112 = arith.constant 112 : index
    %c0_35 = arith.constant 0 : index
    %39 = vector.load %arg2[%c112, %c0_35] : memref<144x32xf32, #tpu.memory_space<vmem>>, vector<16x32xf32>
    %cst_36 = arith.constant dense<0.000000e+00> : vector<32x32xf32>
    %40 = tpu.matmul %38, %39, %cst_36 {dimension_numbers = #tpu.dot_dimension_numbers<[1], [0], [0], [1], [0, 0, 1, 1], [], []>} : vector<32x16xf32>, vector<16x32xf32>, vector<32x32xf32> -> vector<32x32xf32>
    %41 = arith.addf %37, %40 : vector<32x32xf32>
    %c256 = arith.constant 256 : index
    %c0_37 = arith.constant 0 : index
    %42 = vector.load %arg8[%c256, %c0_37] : memref<288x16xf32, #tpu.memory_space<vmem>>, vector<32x16xf32>
    %c128_38 = arith.constant 128 : index
    %c0_39 = arith.constant 0 : index
    %43 = vector.load %arg2[%c128_38, %c0_39] : memref<144x32xf32, #tpu.memory_space<vmem>>, vector<16x32xf32>
    %cst_40 = arith.constant dense<0.000000e+00> : vector<32x32xf32>
    %44 = tpu.matmul %42, %43, %cst_40 {dimension_numbers = #tpu.dot_dimension_numbers<[1], [0], [0], [1], [0, 0, 1, 1], [], []>} : vector<32x16xf32>, vector<16x32xf32>, vector<32x32xf32> -> vector<32x32xf32>
    %45 = arith.addf %41, %44 : vector<32x32xf32>
    %cst_41 = arith.constant 0.000000e+00 : f32
    %46 = vector.broadcast %cst_41 : f32 to vector<32x32xf32>
    %47 = arith.cmpf oge, %45, %46 : vector<32x32xf32>
    %cst_42 = arith.constant 0.00999999977 : f32
    %48 = vector.broadcast %cst_42 : f32 to vector<32x32xf32>
    %49 = arith.mulf %48, %45 : vector<32x32xf32>
    %50 = arith.select %47, %45, %49 : vector<32x32xi1>, vector<32x32xf32>
    %c0_43 = arith.constant 0 : index
    %c0_44 = arith.constant 0 : index
    %51 = vector.load %arg9[%c0_43, %c0_44] : memref<32x32xf32, #tpu.memory_space<vmem>>, vector<32x32xf32>
    tpu.vector_store %arg9[%c0_43, %c0_44], %50 {strides = array<i32>} : memref<32x32xf32, #tpu.memory_space<vmem>>, vector<32x32xf32>,
    %cst_45 = arith.constant 0.000000e+00 : f32
    %52 = vector.broadcast %cst_45 : f32 to vector<2x64xf32>
    %c0_46 = arith.constant 0 : index
    %c0_47 = arith.constant 0 : index
    %53 = vector.load %arg9[%c0_46, %c0_47] : memref<32x32xf32, #tpu.memory_space<vmem>>, vector<2x32xf32>
    %c0_48 = arith.constant 0 : index
    %c0_49 = arith.constant 0 : index
    %54 = vector.load %arg3[%c0_48, %c0_49] : memref<512x64xf32, #tpu.memory_space<vmem>>, vector<32x64xf32>
    %cst_50 = arith.constant dense<0.000000e+00> : vector<2x64xf32>
    %55 = tpu.matmul %53, %54, %cst_50 {dimension_numbers = #tpu.dot_dimension_numbers<[1], [0], [0], [1], [0, 0, 1, 1], [], []>} : vector<2x32xf32>, vector<32x64xf32>, vector<2x64xf32> -> vector<2x64xf32>
    %56 = arith.addf %52, %55 : vector<2x64xf32>
    %c2 = arith.constant 2 : index
    %c0_51 = arith.constant 0 : index
    %57 = vector.load %arg9[%c2, %c0_51] : memref<32x32xf32, #tpu.memory_space<vmem>>, vector<2x32xf32>
    %c32_52 = arith.constant 32 : index
    %c0_53 = arith.constant 0 : index
    %58 = vector.load %arg3[%c32_52, %c0_53] : memref<512x64xf32, #tpu.memory_space<vmem>>, vector<32x64xf32>
    %cst_54 = arith.constant dense<0.000000e+00> : vector<2x64xf32>
    %59 = tpu.matmul %57, %58, %cst_54 {dimension_numbers = #tpu.dot_dimension_numbers<[1], [0], [0], [1], [0, 0, 1, 1], [], []>} : vector<2x32xf32>, vector<32x64xf32>, vector<2x64xf32> -> vector<2x64xf32>
    %60 = arith.addf %56, %59 : vector<2x64xf32>
    %c4 = arith.constant 4 : index
    %c0_55 = arith.constant 0 : index
    %61 = vector.load %arg9[%c4, %c0_55] : memref<32x32xf32, #tpu.memory_space<vmem>>, vector<2x32xf32>
    %c64_56 = arith.constant 64 : index
    %c0_57 = arith.constant 0 : index
    %62 = vector.load %arg3[%c64_56, %c0_57] : memref<512x64xf32, #tpu.memory_space<vmem>>, vector<32x64xf32>
    %cst_58 = arith.constant dense<0.000000e+00> : vector<2x64xf32>
    %63 = tpu.matmul %61, %62, %cst_58 {dimension_numbers = #tpu.dot_dimension_numbers<[1], [0], [0], [1], [0, 0, 1, 1], [], []>} : vector<2x32xf32>, vector<32x64xf32>, vector<2x64xf32> -> vector<2x64xf32>
    %64 = arith.addf %60, %63 : vector<2x64xf32>
    %c6 = arith.constant 6 : index
    %c0_59 = arith.constant 0 : index
    %65 = vector.load %arg9[%c6, %c0_59] : memref<32x32xf32, #tpu.memory_space<vmem>>, vector<2x32xf32>
    %c96_60 = arith.constant 96 : index
    %c0_61 = arith.constant 0 : index
    %66 = vector.load %arg3[%c96_60, %c0_61] : memref<512x64xf32, #tpu.memory_space<vmem>>, vector<32x64xf32>
    %cst_62 = arith.constant dense<0.000000e+00> : vector<2x64xf32>
    %67 = tpu.matmul %65, %66, %cst_62 {dimension_numbers = #tpu.dot_dimension_numbers<[1], [0], [0], [1], [0, 0, 1, 1], [], []>} : vector<2x32xf32>, vector<32x64xf32>, vector<2x64xf32> -> vector<2x64xf32>
    %68 = arith.addf %64, %67 : vector<2x64xf32>
    %c8 = arith.constant 8 : index
    %c0_63 = arith.constant 0 : index
    %69 = vector.load %arg9[%c8, %c0_63] : memref<32x32xf32, #tpu.memory_space<vmem>>, vector<2x32xf32>
    %c128_64 = arith.constant 128 : index
    %c0_65 = arith.constant 0 : index
    %70 = vector.load %arg3[%c128_64, %c0_65] : memref<512x64xf32, #tpu.memory_space<vmem>>, vector<32x64xf32>
    %cst_66 = arith.constant dense<0.000000e+00> : vector<2x64xf32>
    %71 = tpu.matmul %69, %70, %cst_66 {dimension_numbers = #tpu.dot_dimension_numbers<[1], [0], [0], [1], [0, 0, 1, 1], [], []>} : vector<2x32xf32>, vector<32x64xf32>, vector<2x64xf32> -> vector<2x64xf32>
    %72 = arith.addf %68, %71 : vector<2x64xf32>
    %c10 = arith.constant 10 : index
    %c0_67 = arith.constant 0 : index
    %73 = vector.load %arg9[%c10, %c0_67] : memref<32x32xf32, #tpu.memory_space<vmem>>, vector<2x32xf32>
    %c160_68 = arith.constant 160 : index
    %c0_69 = arith.constant 0 : index
    %74 = vector.load %arg3[%c160_68, %c0_69] : memref<512x64xf32, #tpu.memory_space<vmem>>, vector<32x64xf32>
    %cst_70 = arith.constant dense<0.000000e+00> : vector<2x64xf32>
    %75 = tpu.matmul %73, %74, %cst_70 {dimension_numbers = #tpu.dot_dimension_numbers<[1], [0], [0], [1], [0, 0, 1, 1], [], []>} : vector<2x32xf32>, vector<32x64xf32>, vector<2x64xf32> -> vector<2x64xf32>
    %76 = arith.addf %72, %75 : vector<2x64xf32>
    %c12 = arith.constant 12 : index
    %c0_71 = arith.constant 0 : index
    %77 = vector.load %arg9[%c12, %c0_71] : memref<32x32xf32, #tpu.memory_space<vmem>>, vector<2x32xf32>
    %c192_72 = arith.constant 192 : index
    %c0_73 = arith.constant 0 : index
    %78 = vector.load %arg3[%c192_72, %c0_73] : memref<512x64xf32, #tpu.memory_space<vmem>>, vector<32x64xf32>
    %cst_74 = arith.constant dense<0.000000e+00> : vector<2x64xf32>
    %79 = tpu.matmul %77, %78, %cst_74 {dimension_numbers = #tpu.dot_dimension_numbers<[1], [0], [0], [1], [0, 0, 1, 1], [], []>} : vector<2x32xf32>, vector<32x64xf32>, vector<2x64xf32> -> vector<2x64xf32>
    %80 = arith.addf %76, %79 : vector<2x64xf32>
    %c14 = arith.constant 14 : index
    %c0_75 = arith.constant 0 : index
    %81 = vector.load %arg9[%c14, %c0_75] : memref<32x32xf32, #tpu.memory_space<vmem>>, vector<2x32xf32>
    %c224_76 = arith.constant 224 : index
    %c0_77 = arith.constant 0 : index
    %82 = vector.load %arg3[%c224_76, %c0_77] : memref<512x64xf32, #tpu.memory_space<vmem>>, vector<32x64xf32>
    %cst_78 = arith.constant dense<0.000000e+00> : vector<2x64xf32>
    %83 = tpu.matmul %81, %82, %cst_78 {dimension_numbers = #tpu.dot_dimension_numbers<[1], [0], [0], [1], [0, 0, 1, 1], [], []>} : vector<2x32xf32>, vector<32x64xf32>, vector<2x64xf32> -> vector<2x64xf32>
    %84 = arith.addf %80, %83 : vector<2x64xf32>
    %c16_79 = arith.constant 16 : index
    %c0_80 = arith.constant 0 : index
    %85 = vector.load %arg9[%c16_79, %c0_80] : memref<32x32xf32, #tpu.memory_space<vmem>>, vector<2x32xf32>
    %c256_81 = arith.constant 256 : index
    %c0_82 = arith.constant 0 : index
    %86 = vector.load %arg3[%c256_81, %c0_82] : memref<512x64xf32, #tpu.memory_space<vmem>>, vector<32x64xf32>
    %cst_83 = arith.constant dense<0.000000e+00> : vector<2x64xf32>
    %87 = tpu.matmul %85, %86, %cst_83 {dimension_numbers = #tpu.dot_dimension_numbers<[1], [0], [0], [1], [0, 0, 1, 1], [], []>} : vector<2x32xf32>, vector<32x64xf32>, vector<2x64xf32> -> vector<2x64xf32>
    %88 = arith.addf %84, %87 : vector<2x64xf32>
    %c18 = arith.constant 18 : index
    %c0_84 = arith.constant 0 : index
    %89 = vector.load %arg9[%c18, %c0_84] : memref<32x32xf32, #tpu.memory_space<vmem>>, vector<2x32xf32>
    %c288 = arith.constant 288 : index
    %c0_85 = arith.constant 0 : index
    %90 = vector.load %arg3[%c288, %c0_85] : memref<512x64xf32, #tpu.memory_space<vmem>>, vector<32x64xf32>
    %cst_86 = arith.constant dense<0.000000e+00> : vector<2x64xf32>
    %91 = tpu.matmul %89, %90, %cst_86 {dimension_numbers = #tpu.dot_dimension_numbers<[1], [0], [0], [1], [0, 0, 1, 1], [], []>} : vector<2x32xf32>, vector<32x64xf32>, vector<2x64xf32> -> vector<2x64xf32>
    %92 = arith.addf %88, %91 : vector<2x64xf32>
    %c20 = arith.constant 20 : index
    %c0_87 = arith.constant 0 : index
    %93 = vector.load %arg9[%c20, %c0_87] : memref<32x32xf32, #tpu.memory_space<vmem>>, vector<2x32xf32>
    %c320 = arith.constant 320 : index
    %c0_88 = arith.constant 0 : index
    %94 = vector.load %arg3[%c320, %c0_88] : memref<512x64xf32, #tpu.memory_space<vmem>>, vector<32x64xf32>
    %cst_89 = arith.constant dense<0.000000e+00> : vector<2x64xf32>
    %95 = tpu.matmul %93, %94, %cst_89 {dimension_numbers = #tpu.dot_dimension_numbers<[1], [0], [0], [1], [0, 0, 1, 1], [], []>} : vector<2x32xf32>, vector<32x64xf32>, vector<2x64xf32> -> vector<2x64xf32>
    %96 = arith.addf %92, %95 : vector<2x64xf32>
    %c22 = arith.constant 22 : index
    %c0_90 = arith.constant 0 : index
    %97 = vector.load %arg9[%c22, %c0_90] : memref<32x32xf32, #tpu.memory_space<vmem>>, vector<2x32xf32>
    %c352 = arith.constant 352 : index
    %c0_91 = arith.constant 0 : index
    %98 = vector.load %arg3[%c352, %c0_91] : memref<512x64xf32, #tpu.memory_space<vmem>>, vector<32x64xf32>
    %cst_92 = arith.constant dense<0.000000e+00> : vector<2x64xf32>
    %99 = tpu.matmul %97, %98, %cst_92 {dimension_numbers = #tpu.dot_dimension_numbers<[1], [0], [0], [1], [0, 0, 1, 1], [], []>} : vector<2x32xf32>, vector<32x64xf32>, vector<2x64xf32> -> vector<2x64xf32>
    %100 = arith.addf %96, %99 : vector<2x64xf32>
    %c24 = arith.constant 24 : index
    %c0_93 = arith.constant 0 : index
    %101 = vector.load %arg9[%c24, %c0_93] : memref<32x32xf32, #tpu.memory_space<vmem>>, vector<2x32xf32>
    %c384 = arith.constant 384 : index
    %c0_94 = arith.constant 0 : index
    %102 = vector.load %arg3[%c384, %c0_94] : memref<512x64xf32, #tpu.memory_space<vmem>>, vector<32x64xf32>
    %cst_95 = arith.constant dense<0.000000e+00> : vector<2x64xf32>
    %103 = tpu.matmul %101, %102, %cst_95 {dimension_numbers = #tpu.dot_dimension_numbers<[1], [0], [0], [1], [0, 0, 1, 1], [], []>} : vector<2x32xf32>, vector<32x64xf32>, vector<2x64xf32> -> vector<2x64xf32>
    %104 = arith.addf %100, %103 : vector<2x64xf32>
    %c26 = arith.constant 26 : index
    %c0_96 = arith.constant 0 : index
    %105 = vector.load %arg9[%c26, %c0_96] : memref<32x32xf32, #tpu.memory_space<vmem>>, vector<2x32xf32>
    %c416 = arith.constant 416 : index
    %c0_97 = arith.constant 0 : index
    %106 = vector.load %arg3[%c416, %c0_97] : memref<512x64xf32, #tpu.memory_space<vmem>>, vector<32x64xf32>
    %cst_98 = arith.constant dense<0.000000e+00> : vector<2x64xf32>
    %107 = tpu.matmul %105, %106, %cst_98 {dimension_numbers = #tpu.dot_dimension_numbers<[1], [0], [0], [1], [0, 0, 1, 1], [], []>} : vector<2x32xf32>, vector<32x64xf32>, vector<2x64xf32> -> vector<2x64xf32>
    %108 = arith.addf %104, %107 : vector<2x64xf32>
    %c28 = arith.constant 28 : index
    %c0_99 = arith.constant 0 : index
    %109 = vector.load %arg9[%c28, %c0_99] : memref<32x32xf32, #tpu.memory_space<vmem>>, vector<2x32xf32>
    %c448 = arith.constant 448 : index
    %c0_100 = arith.constant 0 : index
    %110 = vector.load %arg3[%c448, %c0_100] : memref<512x64xf32, #tpu.memory_space<vmem>>, vector<32x64xf32>
    %cst_101 = arith.constant dense<0.000000e+00> : vector<2x64xf32>
    %111 = tpu.matmul %109, %110, %cst_101 {dimension_numbers = #tpu.dot_dimension_numbers<[1], [0], [0], [1], [0, 0, 1, 1], [], []>} : vector<2x32xf32>, vector<32x64xf32>, vector<2x64xf32> -> vector<2x64xf32>
    %112 = arith.addf %108, %111 : vector<2x64xf32>
    %c30 = arith.constant 30 : index
    %c0_102 = arith.constant 0 : index
    %113 = vector.load %arg9[%c30, %c0_102] : memref<32x32xf32, #tpu.memory_space<vmem>>, vector<2x32xf32>
    %c480 = arith.constant 480 : index
    %c0_103 = arith.constant 0 : index
    %114 = vector.load %arg3[%c480, %c0_103] : memref<512x64xf32, #tpu.memory_space<vmem>>, vector<32x64xf32>
    %cst_104 = arith.constant dense<0.000000e+00> : vector<2x64xf32>
    %115 = tpu.matmul %113, %114, %cst_104 {dimension_numbers = #tpu.dot_dimension_numbers<[1], [0], [0], [1], [0, 0, 1, 1], [], []>} : vector<2x32xf32>, vector<32x64xf32>, vector<2x64xf32> -> vector<2x64xf32>
    %116 = arith.addf %112, %115 : vector<2x64xf32>
    %c0_105 = arith.constant 0 : index
    %c0_106 = arith.constant 0 : index
    %117 = vector.load %arg4[%c0_105, %c0_106] : memref<1x64xf32, #tpu.memory_space<vmem>>, vector<1x64xf32>
    %118 = vector.broadcast %117 : vector<1x64xf32> to vector<2x64xf32>
    %119 = arith.addf %116, %118 : vector<2x64xf32>
    %cst_107 = arith.constant 0.000000e+00 : f32
    %120 = vector.broadcast %cst_107 : f32 to vector<2x64xf32>
    %121 = arith.cmpf oge, %119, %120 : vector<2x64xf32>
    %cst_108 = arith.constant 0.00999999977 : f32
    %122 = vector.broadcast %cst_108 : f32 to vector<2x64xf32>
    %123 = arith.mulf %122, %119 : vector<2x64xf32>
    %124 = arith.select %121, %119, %123 : vector<2x64xi1>, vector<2x64xf32>
    %c0_109 = arith.constant 0 : index
    %c0_110 = arith.constant 0 : index
    %125 = vector.load %arg5[%c0_109, %c0_110] : memref<64x128xf32, #tpu.memory_space<vmem>>, vector<64x128xf32>
    %cst_111 = arith.constant dense<0.000000e+00> : vector<2x128xf32>
    %126 = tpu.matmul %124, %125, %cst_111 {dimension_numbers = #tpu.dot_dimension_numbers<[1], [0], [0], [1], [0, 0, 1, 1], [], []>} : vector<2x64xf32>, vector<64x128xf32>, vector<2x128xf32> -> vector<2x128xf32>
    %c0_112 = arith.constant 0 : index
    %c0_113 = arith.constant 0 : index
    %127 = vector.load %arg6[%c0_112, %c0_113] : memref<1x128xf32, #tpu.memory_space<vmem>>, vector<1x128xf32>
    %128 = vector.broadcast %127 : vector<1x128xf32> to vector<2x128xf32>
    %129 = arith.addf %126, %128 : vector<2x128xf32>
    %c0_114 = arith.constant 0 : index
    %c0_115 = arith.constant 0 : index
    %130 = vector.load %arg7[%c0_114, %c0_115] : memref<2x128xf32, #tpu.memory_space<vmem>>, vector<2x128xf32>
    tpu.vector_store %arg7[%c0_114, %c0_115], %129 {strides = array<i32>} : memref<2x128xf32, #tpu.memory_space<vmem>>, vector<2x128xf32>,
    return
  }
}

</mosaic_0001>

<llo_original>
// kernel: _lambda_.1
$region0: #{_lambda_.1}
  #allocation0 [shape = 'u32[]', space=smem, size = 0x4, offset = 0x4, fixed_abs, tag = 'smem constant byte address 0x4 - core index']
  #allocation1 [shape = 'u32[72,128]{1,0:T(1,128)}', space=vmem, size = 0x9000, scoped, tag = 'internal scratch']
  #allocation2 [shape = 'f32[288,16]{1,0:T(8,128)}', space=vmem, size = 0x24000, scoped, tag = 'scratch operand']
  #allocation3 [shape = 'f32[32,32]{1,0:T(8,128)}', space=vmem, size = 0x4000, scoped, tag = 'scratch operand']
  %s0 = inlined_call_operand.vmem [shape: f32[288,128], index: 0, kind: input, shape index: {}]
  %s1 = inlined_call_operand.vmem [shape: f32[128,16], index: 1, kind: input, shape index: {}]
  %s2 = inlined_call_operand.vmem [shape: f32[144,32], index: 2, kind: input, shape index: {}]
  %s3 = inlined_call_operand.vmem [shape: f32[512,64], index: 3, kind: input, shape index: {}]
  %s4 = inlined_call_operand.vmem [shape: f32[1,64], index: 4, kind: input, shape index: {}]
  %s5 = inlined_call_operand.vmem [shape: f32[64,128], index: 5, kind: input, shape index: {}]
  %s6 = inlined_call_operand.vmem [shape: f32[1,128], index: 6, kind: input, shape index: {}]
  %s7 = inlined_call_operand.hbm [shape: f32[2,128], index: 7, kind: output, shape index: {}]
  %s8 = sld [smem:[#allocation0]]
  $region38: #{_lambda_.1} parent=0
    _
  %s10 = ssub.s32 1, %s8
  %s11 = scalar_select 0, %s10, %s8
  $region1: #{_lambda_.1} parent=0
    #allocation4 [shape = 'u8[1024]{0}', space=vmem, size = 0x400, scoped, tag = 'output window, operand 0, single buffered']
    #allocation5 [shape = 's32[1]{0}', space=sflag, size = 0x4, scoped, tag = 'scoped memory for _lambda_.1']
    %12 = vsyncpa [#allocation5], 0
    // Predicated region
    $region2: #{_lambda_.1} parent=1 // pred_check
      _
    $region3: #{_lambda_.1} parent=1 // pred_check_branch
      %14 = sbr.rel (0) target = $region5
    $region4: #{_lambda_.1} parent=1 // pred_region
      _
    $region5: #{_lambda_.1} parent=1 // pred_fallthru
      _
    // Predicated region
    $region6: #{_lambda_.1} parent=1 // pred_check
      _
    $region7: #{_lambda_.1} parent=1 // pred_check_branch
      %16 = sbr.rel (0) target = $region9
    $region8: #{_lambda_.1} parent=1 // pred_region
      _
    $region9: #{_lambda_.1} parent=1 // pred_fallthru
      _
    // Predicated region
    $region10: #{_lambda_.1} parent=1 // pred_check
      _
    $region11: #{_lambda_.1} parent=1 // pred_check_branch
      %18 = sbr.rel (0) target = $region13
    $region12: #{_lambda_.1} parent=1 // pred_region
      _
    $region13: #{_lambda_.1} parent=1 // pred_fallthru
      _
    // Predicated region
    $region14: #{_lambda_.1} parent=1 // pred_check
      _
    $region15: #{_lambda_.1} parent=1 // pred_check_branch
      %20 = sbr.rel (0) target = $region17
    $region16: #{_lambda_.1} parent=1 // pred_region
      _
    $region17: #{_lambda_.1} parent=1 // pred_fallthru
      _
    // Predicated region
    $region18: #{_lambda_.1} parent=1 // pred_check
      _
    $region19: #{_lambda_.1} parent=1 // pred_check_branch
      %22 = sbr.rel (0) target = $region21
    $region20: #{_lambda_.1} parent=1 // pred_region
      _
    $region21: #{_lambda_.1} parent=1 // pred_fallthru
      _
    // Predicated region
    $region22: #{_lambda_.1} parent=1 // pred_check
      _
    $region23: #{_lambda_.1} parent=1 // pred_check_branch
      %24 = sbr.rel (0) target = $region25
    $region24: #{_lambda_.1} parent=1 // pred_region
      _
    $region25: #{_lambda_.1} parent=1 // pred_fallthru
      _
    // Predicated region
    $region26: #{_lambda_.1} parent=1 // pred_check
      _
    $region27: #{_lambda_.1} parent=1 // pred_check_branch
      %26 = sbr.rel (0) target = $region29
    $region28: #{_lambda_.1} parent=1 // pred_region
      _
    $region29: #{_lambda_.1} parent=1 // pred_fallthru
      _
    %v27 = vld [vmem:[%s0] sm:$0xff]
    %v28 = vld [vmem:[%s0 + $0x8] sm:$0xff]
    %v29 = vld [vmem:[%s0 + $0x10] sm:$0xff]
    %v30 = vld [vmem:[%s0 + $0x18] sm:$0xff]
    %v31 = vld [vmem:[%s0 + $0x20] sm:$0xff]
    %v32 = vld [vmem:[%s0 + $0x28] sm:$0xff]
    %v33 = vld [vmem:[%s0 + $0x30] sm:$0xff]
    %v34 = vld [vmem:[%s0 + $0x38] sm:$0xff]
    %v35 = vld [vmem:[%s0 + $0x40] sm:$0xff]
    %v36 = vld [vmem:[%s0 + $0x48] sm:$0xff]
    %v37 = vld [vmem:[%s0 + $0x50] sm:$0xff]
    %v38 = vld [vmem:[%s0 + $0x58] sm:$0xff]
    %v39 = vld [vmem:[%s0 + $0x60] sm:$0xff]
    %v40 = vld [vmem:[%s0 + $0x68] sm:$0xff]
    %v41 = vld [vmem:[%s0 + $0x70] sm:$0xff]
    %v42 = vld [vmem:[%s0 + $0x78] sm:$0xff]
    %v43 = vld [vmem:[%s0 + $0x80] sm:$0xff]
    %v44 = vld [vmem:[%s0 + $0x88] sm:$0xff]
    %v45 = vld [vmem:[%s0 + $0x90] sm:$0xff]
    %v46 = vld [vmem:[%s0 + $0x98] sm:$0xff]
    %v47 = vld [vmem:[%s0 + $0xa0] sm:$0xff]
    %v48 = vld [vmem:[%s0 + $0xa8] sm:$0xff]
    %v49 = vld [vmem:[%s0 + $0xb0] sm:$0xff]
    %v50 = vld [vmem:[%s0 + $0xb8] sm:$0xff]
    %v51 = vld [vmem:[%s0 + $0xc0] sm:$0xff]
    %v52 = vld [vmem:[%s0 + $0xc8] sm:$0xff]
    %v53 = vld [vmem:[%s0 + $0xd0] sm:$0xff]
    %v54 = vld [vmem:[%s0 + $0xd8] sm:$0xff]
    %v55 = vld [vmem:[%s0 + $0xe0] sm:$0xff]
    %v56 = vld [vmem:[%s0 + $0xe8] sm:$0xff]
    %v57 = vld [vmem:[%s0 + $0xf0] sm:$0xff]
    %v58 = vld [vmem:[%s0 + $0xf8] sm:$0xff]
    %v59 = vld [vmem:[%s0 + $0x100] sm:$0xff]
    %v60 = vld [vmem:[%s0 + $0x108] sm:$0xff]
    %v61 = vld [vmem:[%s0 + $0x110] sm:$0xff]
    %v62 = vld [vmem:[%s0 + $0x118] sm:$0xff]
    %v63 = vld [vmem:[%s1] sm:$0xff]
    %v64 = vld [vmem:[%s1 + $0x8] sm:$0xff]
    %v65 = vld [vmem:[%s1 + $0x10] sm:$0xff]
    %v66 = vld [vmem:[%s1 + $0x18] sm:$0xff]
    %v67 = vld [vmem:[%s1 + $0x20] sm:$0xff]
    %v68 = vld [vmem:[%s1 + $0x28] sm:$0xff]
    %v69 = vld [vmem:[%s1 + $0x30] sm:$0xff]
    %v70 = vld [vmem:[%s1 + $0x38] sm:$0xff]
    %v71 = vld [vmem:[%s1 + $0x40] sm:$0xff]
    %v72 = vld [vmem:[%s1 + $0x48] sm:$0xff]
    %v73 = vld [vmem:[%s1 + $0x50] sm:$0xff]
    %v74 = vld [vmem:[%s1 + $0x58] sm:$0xff]
    %v75 = vld [vmem:[%s1 + $0x60] sm:$0xff]
    %v76 = vld [vmem:[%s1 + $0x68] sm:$0xff]
    %v77 = vld [vmem:[%s1 + $0x70] sm:$0xff]
    %v78 = vld [vmem:[%s1 + $0x78] sm:$0xff]
    %79 = vmatpush.msra.mxu0 %v78
    %80 = vmatpush.msra.mxu0 %v77
    %81 = vmatpush.msra.mxu0 %v76
    %82 = vmatpush.msra.mxu0 %v75
    %83 = vmatpush.msra.mxu0 %v74
    %84 = vmatpush.msra.mxu0 %v73
    %85 = vmatpush.msra.mxu0 %v72
    %86 = vmatpush.msra.mxu0 %v71
    %87 = vmatpush.msra.mxu0 %v70
    %88 = vmatpush.msra.mxu0 %v69
    %89 = vmatpush.msra.mxu0 %v68
    %90 = vmatpush.msra.mxu0 %v67
    %91 = vmatpush.msra.mxu0 %v66
    %92 = vmatpush.msra.mxu0 %v65
    %93 = vmatpush.msra.mxu0 %v64
    %94 = vmatpush.msra.mxu0 %v63
    %95 = vmatmul.f32.gmra.mxu0 %v27
    %v96 = vpop.f32.mrf.mxu0
    %v97 = vadd.f32 0.0, %v96
    %98 = vmatmul.f32.gmra.mxu0 %v28
    %v99 = vpop.f32.mrf.mxu0
    %v100 = vadd.f32 0.0, %v99
    %101 = vmatmul.f32.gmra.mxu0 %v29
    %v102 = vpop.f32.mrf.mxu0
    %v103 = vadd.f32 0.0, %v102
    %104 = vmatmul.f32.gmra.mxu0 %v30
    %v105 = vpop.f32.mrf.mxu0
    %v106 = vadd.f32 0.0, %v105
    %107 = vmatmul.f32.gmra.mxu0 %v31
    %v108 = vpop.f32.mrf.mxu0
    %v109 = vadd.f32 0.0, %v108
    %110 = vmatmul.f32.gmra.mxu0 %v32
    %v111 = vpop.f32.mrf.mxu0
    %v112 = vadd.f32 0.0, %v111
    %113 = vmatmul.f32.gmra.mxu0 %v33
    %v114 = vpop.f32.mrf.mxu0
    %v115 = vadd.f32 0.0, %v114
    %116 = vmatmul.f32.gmra.mxu0 %v34
    %v117 = vpop.f32.mrf.mxu0
    %v118 = vadd.f32 0.0, %v117
    %119 = vmatmul.f32.gmra.mxu0 %v35
    %v120 = vpop.f32.mrf.mxu0
    %v121 = vadd.f32 0.0, %v120
    %122 = vmatmul.f32.gmra.mxu0 %v36
    %v123 = vpop.f32.mrf.mxu0
    %v124 = vadd.f32 0.0, %v123
    %125 = vmatmul.f32.gmra.mxu0 %v37
    %v126 = vpop.f32.mrf.mxu0
    %v127 = vadd.f32 0.0, %v126
    %128 = vmatmul.f32.gmra.mxu0 %v38
    %v129 = vpop.f32.mrf.mxu0
    %v130 = vadd.f32 0.0, %v129
    %131 = vmatmul.f32.gmra.mxu0 %v39
    %v132 = vpop.f32.mrf.mxu0
    %v133 = vadd.f32 0.0, %v132
    %134 = vmatmul.f32.gmra.mxu0 %v40
    %v135 = vpop.f32.mrf.mxu0
    %v136 = vadd.f32 0.0, %v135
    %137 = vmatmul.f32.gmra.mxu0 %v41
    %v138 = vpop.f32.mrf.mxu0
    %v139 = vadd.f32 0.0, %v138
    %140 = vmatmul.f32.gmra.mxu0 %v42
    %v141 = vpop.f32.mrf.mxu0
    %v142 = vadd.f32 0.0, %v141
    %143 = vmatmul.f32.gmra.mxu0 %v43
    %v144 = vpop.f32.mrf.mxu0
    %v145 = vadd.f32 0.0, %v144
    %146 = vmatmul.f32.gmra.mxu0 %v44
    %v147 = vpop.f32.mrf.mxu0
    %v148 = vadd.f32 0.0, %v147
    %149 = vmatmul.f32.gmra.mxu0 %v45
    %v150 = vpop.f32.mrf.mxu0
    %v151 = vadd.f32 0.0, %v150
    %152 = vmatmul.f32.gmra.mxu0 %v46
    %v153 = vpop.f32.mrf.mxu0
    %v154 = vadd.f32 0.0, %v153
    %155 = vmatmul.f32.gmra.mxu0 %v47
    %v156 = vpop.f32.mrf.mxu0
    %v157 = vadd.f32 0.0, %v156
    %158 = vmatmul.f32.gmra.mxu0 %v48
    %v159 = vpop.f32.mrf.mxu0
    %v160 = vadd.f32 0.0, %v159
    %161 = vmatmul.f32.gmra.mxu0 %v49
    %v162 = vpop.f32.mrf.mxu0
    %v163 = vadd.f32 0.0, %v162
    %164 = vmatmul.f32.gmra.mxu0 %v50
    %v165 = vpop.f32.mrf.mxu0
    %v166 = vadd.f32 0.0, %v165
    %167 = vmatmul.f32.gmra.mxu0 %v51
    %v168 = vpop.f32.mrf.mxu0
    %v169 = vadd.f32 0.0, %v168
    %170 = vmatmul.f32.gmra.mxu0 %v52
    %v171 = vpop.f32.mrf.mxu0
    %v172 = vadd.f32 0.0, %v171
    %173 = vmatmul.f32.gmra.mxu0 %v53
    %v174 = vpop.f32.mrf.mxu0
    %v175 = vadd.f32 0.0, %v174
    %176 = vmatmul.f32.gmra.mxu0 %v54
    %v177 = vpop.f32.mrf.mxu0
    %v178 = vadd.f32 0.0, %v177
    %179 = vmatmul.f32.gmra.mxu0 %v55
    %v180 = vpop.f32.mrf.mxu0
    %v181 = vadd.f32 0.0, %v180
    %182 = vmatmul.f32.gmra.mxu0 %v56
    %v183 = vpop.f32.mrf.mxu0
    %v184 = vadd.f32 0.0, %v183
    %185 = vmatmul.f32.gmra.mxu0 %v57
    %v186 = vpop.f32.mrf.mxu0
    %v187 = vadd.f32 0.0, %v186
    %188 = vmatmul.f32.gmra.mxu0 %v58
    %v189 = vpop.f32.mrf.mxu0
    %v190 = vadd.f32 0.0, %v189
    %191 = vmatmul.f32.gmra.mxu0 %v59
    %v192 = vpop.f32.mrf.mxu0
    %v193 = vadd.f32 0.0, %v192
    %194 = vmatmul.f32.gmra.mxu0 %v60
    %v195 = vpop.f32.mrf.mxu0
    %v196 = vadd.f32 0.0, %v195
    %197 = vmatmul.f32.gmra.mxu0 %v61
    %v198 = vpop.f32.mrf.mxu0
    %v199 = vadd.f32 0.0, %v198
    %200 = vmatmul.f32.gmra.mxu0 %v62
    %v201 = vpop.f32.mrf.mxu0
    %v202 = vadd.f32 0.0, %v201
    %203 = vdwg.mxu0
    %vm204 = vcmp.ge.f32.partialorder %v97, 0.0
    %vm205 = vcmp.ge.f32.partialorder %v100, 0.0
    %vm206 = vcmp.ge.f32.partialorder %v103, 0.0
    %vm207 = vcmp.ge.f32.partialorder %v106, 0.0
    %vm208 = vcmp.ge.f32.partialorder %v109, 0.0
    %vm209 = vcmp.ge.f32.partialorder %v112, 0.0
    %vm210 = vcmp.ge.f32.partialorder %v115, 0.0
    %vm211 = vcmp.ge.f32.partialorder %v118, 0.0
    %vm212 = vcmp.ge.f32.partialorder %v121, 0.0
    %vm213 = vcmp.ge.f32.partialorder %v124, 0.0
    %vm214 = vcmp.ge.f32.partialorder %v127, 0.0
    %vm215 = vcmp.ge.f32.partialorder %v130, 0.0
    %vm216 = vcmp.ge.f32.partialorder %v133, 0.0
    %vm217 = vcmp.ge.f32.partialorder %v136, 0.0
    %vm218 = vcmp.ge.f32.partialorder %v139, 0.0
    %vm219 = vcmp.ge.f32.partialorder %v142, 0.0
    %vm220 = vcmp.ge.f32.partialorder %v145, 0.0
    %vm221 = vcmp.ge.f32.partialorder %v148, 0.0
    %vm222 = vcmp.ge.f32.partialorder %v151, 0.0
    %vm223 = vcmp.ge.f32.partialorder %v154, 0.0
    %vm224 = vcmp.ge.f32.partialorder %v157, 0.0
    %vm225 = vcmp.ge.f32.partialorder %v160, 0.0
    %vm226 = vcmp.ge.f32.partialorder %v163, 0.0
    %vm227 = vcmp.ge.f32.partialorder %v166, 0.0
    %vm228 = vcmp.ge.f32.partialorder %v169, 0.0
    %vm229 = vcmp.ge.f32.partialorder %v172, 0.0
    %vm230 = vcmp.ge.f32.partialorder %v175, 0.0
    %vm231 = vcmp.ge.f32.partialorder %v178, 0.0
    %vm232 = vcmp.ge.f32.partialorder %v181, 0.0
    %vm233 = vcmp.ge.f32.partialorder %v184, 0.0
    %vm234 = vcmp.ge.f32.partialorder %v187, 0.0
    %vm235 = vcmp.ge.f32.partialorder %v190, 0.0
    %vm236 = vcmp.ge.f32.partialorder %v193, 0.0
    %vm237 = vcmp.ge.f32.partialorder %v196, 0.0
    %vm238 = vcmp.ge.f32.partialorder %v199, 0.0
    %vm239 = vcmp.ge.f32.partialorder %v202, 0.0
    %v240 = vmul.f32 %v97, 0.01
    %v241 = vmul.f32 %v100, 0.01
    %v242 = vmul.f32 %v103, 0.01
    %v243 = vmul.f32 %v106, 0.01
    %v244 = vmul.f32 %v109, 0.01
    %v245 = vmul.f32 %v112, 0.01
    %v246 = vmul.f32 %v115, 0.01
    %v247 = vmul.f32 %v118, 0.01
    %v248 = vmul.f32 %v121, 0.01
    %v249 = vmul.f32 %v124, 0.01
    %v250 = vmul.f32 %v127, 0.01
    %v251 = vmul.f32 %v130, 0.01
    %v252 = vmul.f32 %v133, 0.01
    %v253 = vmul.f32 %v136, 0.01
    %v254 = vmul.f32 %v139, 0.01
    %v255 = vmul.f32 %v142, 0.01
    %v256 = vmul.f32 %v145, 0.01
    %v257 = vmul.f32 %v148, 0.01
    %v258 = vmul.f32 %v151, 0.01
    %v259 = vmul.f32 %v154, 0.01
    %v260 = vmul.f32 %v157, 0.01
    %v261 = vmul.f32 %v160, 0.01
    %v262 = vmul.f32 %v163, 0.01
    %v263 = vmul.f32 %v166, 0.01
    %v264 = vmul.f32 %v169, 0.01
    %v265 = vmul.f32 %v172, 0.01
    %v266 = vmul.f32 %v175, 0.01
    %v267 = vmul.f32 %v178, 0.01
    %v268 = vmul.f32 %v181, 0.01
    %v269 = vmul.f32 %v184, 0.01
    %v270 = vmul.f32 %v187, 0.01
    %v271 = vmul.f32 %v190, 0.01
    %v272 = vmul.f32 %v193, 0.01
    %v273 = vmul.f32 %v196, 0.01
    %v274 = vmul.f32 %v199, 0.01
    %v275 = vmul.f32 %v202, 0.01
    %v276 = vsel %vm204, %v97, %v240
    %v277 = vsel %vm205, %v100, %v241
    %v278 = vsel %vm206, %v103, %v242
    %v279 = vsel %vm207, %v106, %v243
    %v280 = vsel %vm208, %v109, %v244
    %v281 = vsel %vm209, %v112, %v245
    %v282 = vsel %vm210, %v115, %v246
    %v283 = vsel %vm211, %v118, %v247
    %v284 = vsel %vm212, %v121, %v248
    %v285 = vsel %vm213, %v124, %v249
    %v286 = vsel %vm214, %v127, %v250
    %v287 = vsel %vm215, %v130, %v251
    %v288 = vsel %vm216, %v133, %v252
    %v289 = vsel %vm217, %v136, %v253
    %v290 = vsel %vm218, %v139, %v254
    %v291 = vsel %vm219, %v142, %v255
    %v292 = vsel %vm220, %v145, %v256
    %v293 = vsel %vm221, %v148, %v257
    %v294 = vsel %vm222, %v151, %v258
    %v295 = vsel %vm223, %v154, %v259
    %v296 = vsel %vm224, %v157, %v260
    %v297 = vsel %vm225, %v160, %v261
    %v298 = vsel %vm226, %v163, %v262
    %v299 = vsel %vm227, %v166, %v263
    %v300 = vsel %vm228, %v169, %v264
    %v301 = vsel %vm229, %v172, %v265
    %v302 = vsel %vm230, %v175, %v266
    %v303 = vsel %vm231, %v178, %v267
    %v304 = vsel %vm232, %v181, %v268
    %v305 = vsel %vm233, %v184, %v269
    %v306 = vsel %vm234, %v187, %v270
    %v307 = vsel %vm235, %v190, %v271
    %v308 = vsel %vm236, %v193, %v272
    %v309 = vsel %vm237, %v196, %v273
    %v310 = vsel %vm238, %v199, %v274
    %v311 = vsel %vm239, %v202, %v275
    %vm312 = vcmask 130048
    %313 = vst.msk [vmem:[#allocation2] sm:$0xff] %vm312, %v276
    %314 = vst.msk [vmem:[#allocation2 + $0x8] sm:$0xff] %vm312, %v277
    %315 = vst.msk [vmem:[#allocation2 + $0x10] sm:$0xff] %vm312, %v278
    %316 = vst.msk [vmem:[#allocation2 + $0x18] sm:$0xff] %vm312, %v279
    %317 = vst.msk [vmem:[#allocation2 + $0x20] sm:$0xff] %vm312, %v280
    %318 = vst.msk [vmem:[#allocation2 + $0x28] sm:$0xff] %vm312, %v281
    %319 = vst.msk [vmem:[#allocation2 + $0x30] sm:$0xff] %vm312, %v282
    %320 = vst.msk [vmem:[#allocation2 + $0x38] sm:$0xff] %vm312, %v283
    %321 = vst.msk [vmem:[#allocation2 + $0x40] sm:$0xff] %vm312, %v284
    %322 = vst.msk [vmem:[#allocation2 + $0x48] sm:$0xff] %vm312, %v285
    %323 = vst.msk [vmem:[#allocation2 + $0x50] sm:$0xff] %vm312, %v286
    %324 = vst.msk [vmem:[#allocation2 + $0x58] sm:$0xff] %vm312, %v287
    %325 = vst.msk [vmem:[#allocation2 + $0x60] sm:$0xff] %vm312, %v288
    %326 = vst.msk [vmem:[#allocation2 + $0x68] sm:$0xff] %vm312, %v289
    %327 = vst.msk [vmem:[#allocation2 + $0x70] sm:$0xff] %vm312, %v290
    %328 = vst.msk [vmem:[#allocation2 + $0x78] sm:$0xff] %vm312, %v291
    %329 = vst.msk [vmem:[#allocation2 + $0x80] sm:$0xff] %vm312, %v292
    %330 = vst.msk [vmem:[#allocation2 + $0x88] sm:$0xff] %vm312, %v293
    %331 = vst.msk [vmem:[#allocation2 + $0x90] sm:$0xff] %vm312, %v294
    %332 = vst.msk [vmem:[#allocation2 + $0x98] sm:$0xff] %vm312, %v295
    %333 = vst.msk [vmem:[#allocation2 + $0xa0] sm:$0xff] %vm312, %v296
    %334 = vst.msk [vmem:[#allocation2 + $0xa8] sm:$0xff] %vm312, %v297
    %335 = vst.msk [vmem:[#allocation2 + $0xb0] sm:$0xff] %vm312, %v298
    %336 = vst.msk [vmem:[#allocation2 + $0xb8] sm:$0xff] %vm312, %v299
    %337 = vst.msk [vmem:[#allocation2 + $0xc0] sm:$0xff] %vm312, %v300
    %338 = vst.msk [vmem:[#allocation2 + $0xc8] sm:$0xff] %vm312, %v301
    %339 = vst.msk [vmem:[#allocation2 + $0xd0] sm:$0xff] %vm312, %v302
    %340 = vst.msk [vmem:[#allocation2 + $0xd8] sm:$0xff] %vm312, %v303
    %341 = vst.msk [vmem:[#allocation2 + $0xe0] sm:$0xff] %vm312, %v304
    %342 = vst.msk [vmem:[#allocation2 + $0xe8] sm:$0xff] %vm312, %v305
    %343 = vst.msk [vmem:[#allocation2 + $0xf0] sm:$0xff] %vm312, %v306
    %344 = vst.msk [vmem:[#allocation2 + $0xf8] sm:$0xff] %vm312, %v307
    %345 = vst.msk [vmem:[#allocation2 + $0x100] sm:$0xff] %vm312, %v308
    %346 = vst.msk [vmem:[#allocation2 + $0x108] sm:$0xff] %vm312, %v309
    %347 = vst.msk [vmem:[#allocation2 + $0x110] sm:$0xff] %vm312, %v310
    %348 = vst.msk [vmem:[#allocation2 + $0x118] sm:$0xff] %vm312, %v311
    %v349 = vld [vmem:[#allocation2] sm:$0xff]
    %v350 = vld [vmem:[#allocation2 + $0x8] sm:$0xff]
    %v351 = vld [vmem:[#allocation2 + $0x10] sm:$0xff]
    %v352 = vld [vmem:[#allocation2 + $0x18] sm:$0xff]
    %v353 = vld [vmem:[%s2] sm:$0xff]
    %v354 = vld [vmem:[%s2 + $0x8] sm:$0xff]
    %v355 = vld [vmem:[#allocation2 + $0x20] sm:$0xff]
    %v356 = vld [vmem:[#allocation2 + $0x28] sm:$0xff]
    %v357 = vld [vmem:[#allocation2 + $0x30] sm:$0xff]
    %v358 = vld [vmem:[#allocation2 + $0x38] sm:$0xff]
    %v359 = vld [vmem:[%s2 + $0x10] sm:$0xff]
    %v360 = vld [vmem:[%s2 + $0x18] sm:$0xff]
    %v362 = vsel %vm312, %v355, 0
    %v365 = vsel %vm312, %v356, 0
    %v368 = vsel %vm312, %v357, 0
    %v371 = vsel %vm312, %v358, 0
    %373 = vmatpush.msra.mxu0 0.0
    %374 = vmatpush.msra.mxu0 0.0
    %375 = vmatpush.msra.mxu0 0.0
    %376 = vmatpush.msra.mxu0 0.0
    %377 = vmatpush.msra.mxu0 0.0
    %378 = vmatpush.msra.mxu0 0.0
    %379 = vmatpush.msra.mxu0 0.0
    %380 = vmatpush.msra.mxu0 0.0
    %381 = vmatpush.msra.mxu0 0.0
    %382 = vmatpush.msra.mxu0 0.0
    %383 = vmatpush.msra.mxu0 0.0
    %384 = vmatpush.msra.mxu0 0.0
    %385 = vmatpush.msra.mxu0 0.0
    %386 = vmatpush.msra.mxu0 0.0
    %387 = vmatpush.msra.mxu0 %v360
    %388 = vmatpush.msra.mxu0 %v359
    %389 = vmatmul.f32.gmra.mxu0 %v362
    %v390 = vpop.f32.mrf.mxu0
    %v391 = vadd.f32 0.0, %v390
    %392 = vmatmul.f32.gmra.mxu0 %v365
    %v393 = vpop.f32.mrf.mxu0
    %v394 = vadd.f32 0.0, %v393
    %395 = vmatmul.f32.gmra.mxu0 %v368
    %v396 = vpop.f32.mrf.mxu0
    %v397 = vadd.f32 0.0, %v396
    %398 = vmatmul.f32.gmra.mxu0 %v371
    %v399 = vpop.f32.mrf.mxu0
    %v400 = vadd.f32 0.0, %v399
    %401 = vdwg.mxu0
    %v403 = vsel %vm312, %v349, 0
    %v406 = vsel %vm312, %v350, 0
    %v409 = vsel %vm312, %v351, 0
    %v412 = vsel %vm312, %v352, 0
    %414 = vmatpush.msra.mxu0 0.0
    %415 = vmatpush.msra.mxu0 0.0
    %416 = vmatpush.msra.mxu0 0.0
    %417 = vmatpush.msra.mxu0 0.0
    %418 = vmatpush.msra.mxu0 0.0
    %419 = vmatpush.msra.mxu0 0.0
    %420 = vmatpush.msra.mxu0 0.0
    %421 = vmatpush.msra.mxu0 0.0
    %422 = vmatpush.msra.mxu0 0.0
    %423 = vmatpush.msra.mxu0 0.0
    %424 = vmatpush.msra.mxu0 0.0
    %425 = vmatpush.msra.mxu0 0.0
    %426 = vmatpush.msra.mxu0 0.0
    %427 = vmatpush.msra.mxu0 0.0
    %428 = vmatpush.msra.mxu0 %v354
    %429 = vmatpush.msra.mxu0 %v353
    %430 = vmatmul.f32.gmra.mxu0 %v403
    %v431 = vpop.f32.mrf.mxu0
    %v432 = vadd.f32 %v391, %v431
    %433 = vmatmul.f32.gmra.mxu0 %v406
    %v434 = vpop.f32.mrf.mxu0
    %v435 = vadd.f32 %v394, %v434
    %436 = vmatmul.f32.gmra.mxu0 %v409
    %v437 = vpop.f32.mrf.mxu0
    %v438 = vadd.f32 %v397, %v437
    %439 = vmatmul.f32.gmra.mxu0 %v412
    %v440 = vpop.f32.mrf.mxu0
    %v441 = vadd.f32 %v400, %v440
    %442 = vdwg.mxu0
    %v443 = vld [vmem:[#allocation2 + $0x40] sm:$0xff]
    %v444 = vld [vmem:[#allocation2 + $0x48] sm:$0xff]
    %v445 = vld [vmem:[#allocation2 + $0x50] sm:$0xff]
    %v446 = vld [vmem:[#allocation2 + $0x58] sm:$0xff]
    %v447 = vld [vmem:[%s2 + $0x20] sm:$0xff]
    %v448 = vld [vmem:[%s2 + $0x28] sm:$0xff]
    %v450 = vsel %vm312, %v443, 0
    %v453 = vsel %vm312, %v444, 0
    %v456 = vsel %vm312, %v445, 0
    %v459 = vsel %vm312, %v446, 0
    %461 = vmatpush.msra.mxu0 0.0
    %462 = vmatpush.msra.mxu0 0.0
    %463 = vmatpush.msra.mxu0 0.0
    %464 = vmatpush.msra.mxu0 0.0
    %465 = vmatpush.msra.mxu0 0.0
    %466 = vmatpush.msra.mxu0 0.0
    %467 = vmatpush.msra.mxu0 0.0
    %468 = vmatpush.msra.mxu0 0.0
    %469 = vmatpush.msra.mxu0 0.0
    %470 = vmatpush.msra.mxu0 0.0
    %471 = vmatpush.msra.mxu0 0.0
    %472 = vmatpush.msra.mxu0 0.0
    %473 = vmatpush.msra.mxu0 0.0
    %474 = vmatpush.msra.mxu0 0.0
    %475 = vmatpush.msra.mxu0 %v448
    %476 = vmatpush.msra.mxu0 %v447
    %477 = vmatmul.f32.gmra.mxu0 %v450
    %v478 = vpop.f32.mrf.mxu0
    %v479 = vadd.f32 0.0, %v478
    %480 = vmatmul.f32.gmra.mxu0 %v453
    %v481 = vpop.f32.mrf.mxu0
    %v482 = vadd.f32 0.0, %v481
    %483 = vmatmul.f32.gmra.mxu0 %v456
    %v484 = vpop.f32.mrf.mxu0
    %v485 = vadd.f32 0.0, %v484
    %486 = vmatmul.f32.gmra.mxu0 %v459
    %v487 = vpop.f32.mrf.mxu0
    %v488 = vadd.f32 0.0, %v487
    %489 = vdwg.mxu0
    %v490 = vadd.f32 %v432, %v479
    %v491 = vadd.f32 %v435, %v482
    %v492 = vadd.f32 %v438, %v485
    %v493 = vadd.f32 %v441, %v488
    %v494 = vld [vmem:[#allocation2 + $0x60] sm:$0xff]
    %v495 = vld [vmem:[#allocation2 + $0x68] sm:$0xff]
    %v496 = vld [vmem:[#allocation2 + $0x70] sm:$0xff]
    %v497 = vld [vmem:[#allocation2 + $0x78] sm:$0xff]
    %v498 = vld [vmem:[%s2 + $0x30] sm:$0xff]
    %v499 = vld [vmem:[%s2 + $0x38] sm:$0xff]
    %v501 = vsel %vm312, %v494, 0
    %v504 = vsel %vm312, %v495, 0
    %v507 = vsel %vm312, %v496, 0
    %v510 = vsel %vm312, %v497, 0
    %512 = vmatpush.msra.mxu0 0.0
    %513 = vmatpush.msra.mxu0 0.0
    %514 = vmatpush.msra.mxu0 0.0
    %515 = vmatpush.msra.mxu0 0.0
    %516 = vmatpush.msra.mxu0 0.0
    %517 = vmatpush.msra.mxu0 0.0
    %518 = vmatpush.msra.mxu0 0.0
    %519 = vmatpush.msra.mxu0 0.0
    %520 = vmatpush.msra.mxu0 0.0
    %521 = vmatpush.msra.mxu0 0.0
    %522 = vmatpush.msra.mxu0 0.0
    %523 = vmatpush.msra.mxu0 0.0
    %524 = vmatpush.msra.mxu0 0.0
    %525 = vmatpush.msra.mxu0 0.0
    %526 = vmatpush.msra.mxu0 %v499
    %527 = vmatpush.msra.mxu0 %v498
    %528 = vmatmul.f32.gmra.mxu0 %v501
    %v529 = vpop.f32.mrf.mxu0
    %v530 = vadd.f32 0.0, %v529
    %531 = vmatmul.f32.gmra.mxu0 %v504
    %v532 = vpop.f32.mrf.mxu0
    %v533 = vadd.f32 0.0, %v532
    %534 = vmatmul.f32.gmra.mxu0 %v507
    %v535 = vpop.f32.mrf.mxu0
    %v536 = vadd.f32 0.0, %v535
    %537 = vmatmul.f32.gmra.mxu0 %v510
    %v538 = vpop.f32.mrf.mxu0
    %v539 = vadd.f32 0.0, %v538
    %540 = vdwg.mxu0
    %v541 = vadd.f32 %v490, %v530
    %v542 = vadd.f32 %v491, %v533
    %v543 = vadd.f32 %v492, %v536
    %v544 = vadd.f32 %v493, %v539
    %v545 = vld [vmem:[#allocation2 + $0x80] sm:$0xff]
    %v546 = vld [vmem:[#allocation2 + $0x88] sm:$0xff]
    %v547 = vld [vmem:[#allocation2 + $0x90] sm:$0xff]
    %v548 = vld [vmem:[#allocation2 + $0x98] sm:$0xff]
    %v549 = vld [vmem:[%s2 + $0x40] sm:$0xff]
    %v550 = vld [vmem:[%s2 + $0x48] sm:$0xff]
    %v552 = vsel %vm312, %v545, 0
    %v555 = vsel %vm312, %v546, 0
    %v558 = vsel %vm312, %v547, 0
    %v561 = vsel %vm312, %v548, 0
    %563 = vmatpush.msra.mxu0 0.0
    %564 = vmatpush.msra.mxu0 0.0
    %565 = vmatpush.msra.mxu0 0.0
    %566 = vmatpush.msra.mxu0 0.0
    %567 = vmatpush.msra.mxu0 0.0
    %568 = vmatpush.msra.mxu0 0.0
    %569 = vmatpush.msra.mxu0 0.0
    %570 = vmatpush.msra.mxu0 0.0
    %571 = vmatpush.msra.mxu0 0.0
    %572 = vmatpush.msra.mxu0 0.0
    %573 = vmatpush.msra.mxu0 0.0
    %574 = vmatpush.msra.mxu0 0.0
    %575 = vmatpush.msra.mxu0 0.0
    %576 = vmatpush.msra.mxu0 0.0
    %577 = vmatpush.msra.mxu0 %v550
    %578 = vmatpush.msra.mxu0 %v549
    %579 = vmatmul.f32.gmra.mxu0 %v552
    %v580 = vpop.f32.mrf.mxu0
    %v581 = vadd.f32 0.0, %v580
    %582 = vmatmul.f32.gmra.mxu0 %v555
    %v583 = vpop.f32.mrf.mxu0
    %v584 = vadd.f32 0.0, %v583
    %585 = vmatmul.f32.gmra.mxu0 %v558
    %v586 = vpop.f32.mrf.mxu0
    %v587 = vadd.f32 0.0, %v586
    %588 = vmatmul.f32.gmra.mxu0 %v561
    %v589 = vpop.f32.mrf.mxu0
    %v590 = vadd.f32 0.0, %v589
    %591 = vdwg.mxu0
    %v592 = vadd.f32 %v541, %v581
    %v593 = vadd.f32 %v542, %v584
    %v594 = vadd.f32 %v543, %v587
    %v595 = vadd.f32 %v544, %v590
    %v596 = vld [vmem:[#allocation2 + $0xa0] sm:$0xff]
    %v597 = vld [vmem:[#allocation2 + $0xa8] sm:$0xff]
    %v598 = vld [vmem:[#allocation2 + $0xb0] sm:$0xff]
    %v599 = vld [vmem:[#allocation2 + $0xb8] sm:$0xff]
    %v600 = vld [vmem:[%s2 + $0x50] sm:$0xff]
    %v601 = vld [vmem:[%s2 + $0x58] sm:$0xff]
    %v603 = vsel %vm312, %v596, 0
    %v606 = vsel %vm312, %v597, 0
    %v609 = vsel %vm312, %v598, 0
    %v612 = vsel %vm312, %v599, 0
    %614 = vmatpush.msra.mxu0 0.0
    %615 = vmatpush.msra.mxu0 0.0
    %616 = vmatpush.msra.mxu0 0.0
    %617 = vmatpush.msra.mxu0 0.0
    %618 = vmatpush.msra.mxu0 0.0
    %619 = vmatpush.msra.mxu0 0.0
    %620 = vmatpush.msra.mxu0 0.0
    %621 = vmatpush.msra.mxu0 0.0
    %622 = vmatpush.msra.mxu0 0.0
    %623 = vmatpush.msra.mxu0 0.0
    %624 = vmatpush.msra.mxu0 0.0
    %625 = vmatpush.msra.mxu0 0.0
    %626 = vmatpush.msra.mxu0 0.0
    %627 = vmatpush.msra.mxu0 0.0
    %628 = vmatpush.msra.mxu0 %v601
    %629 = vmatpush.msra.mxu0 %v600
    %630 = vmatmul.f32.gmra.mxu0 %v603
    %v631 = vpop.f32.mrf.mxu0
    %v632 = vadd.f32 0.0, %v631
    %633 = vmatmul.f32.gmra.mxu0 %v606
    %v634 = vpop.f32.mrf.mxu0
    %v635 = vadd.f32 0.0, %v634
    %636 = vmatmul.f32.gmra.mxu0 %v609
    %v637 = vpop.f32.mrf.mxu0
    %v638 = vadd.f32 0.0, %v637
    %639 = vmatmul.f32.gmra.mxu0 %v612
    %v640 = vpop.f32.mrf.mxu0
    %v641 = vadd.f32 0.0, %v640
    %642 = vdwg.mxu0
    %v643 = vadd.f32 %v592, %v632
    %v644 = vadd.f32 %v593, %v635
    %v645 = vadd.f32 %v594, %v638
    %v646 = vadd.f32 %v595, %v641
    %v647 = vld [vmem:[#allocation2 + $0xc0] sm:$0xff]
    %v648 = vld [vmem:[#allocation2 + $0xc8] sm:$0xff]
    %v649 = vld [vmem:[#allocation2 + $0xd0] sm:$0xff]
    %v650 = vld [vmem:[#allocation2 + $0xd8] sm:$0xff]
    %v651 = vld [vmem:[%s2 + $0x60] sm:$0xff]
    %v652 = vld [vmem:[%s2 + $0x68] sm:$0xff]
    %v654 = vsel %vm312, %v647, 0
    %v657 = vsel %vm312, %v648, 0
    %v660 = vsel %vm312, %v649, 0
    %v663 = vsel %vm312, %v650, 0
    %665 = vmatpush.msra.mxu0 0.0
    %666 = vmatpush.msra.mxu0 0.0
    %667 = vmatpush.msra.mxu0 0.0
    %668 = vmatpush.msra.mxu0 0.0
    %669 = vmatpush.msra.mxu0 0.0
    %670 = vmatpush.msra.mxu0 0.0
    %671 = vmatpush.msra.mxu0 0.0
    %672 = vmatpush.msra.mxu0 0.0
    %673 = vmatpush.msra.mxu0 0.0
    %674 = vmatpush.msra.mxu0 0.0
    %675 = vmatpush.msra.mxu0 0.0
    %676 = vmatpush.msra.mxu0 0.0
    %677 = vmatpush.msra.mxu0 0.0
    %678 = vmatpush.msra.mxu0 0.0
    %679 = vmatpush.msra.mxu0 %v652
    %680 = vmatpush.msra.mxu0 %v651
    %681 = vmatmul.f32.gmra.mxu0 %v654
    %v682 = vpop.f32.mrf.mxu0
    %v683 = vadd.f32 0.0, %v682
    %684 = vmatmul.f32.gmra.mxu0 %v657
    %v685 = vpop.f32.mrf.mxu0
    %v686 = vadd.f32 0.0, %v685
    %687 = vmatmul.f32.gmra.mxu0 %v660
    %v688 = vpop.f32.mrf.mxu0
    %v689 = vadd.f32 0.0, %v688
    %690 = vmatmul.f32.gmra.mxu0 %v663
    %v691 = vpop.f32.mrf.mxu0
    %v692 = vadd.f32 0.0, %v691
    %693 = vdwg.mxu0
    %v694 = vadd.f32 %v643, %v683
    %v695 = vadd.f32 %v644, %v686
    %v696 = vadd.f32 %v645, %v689
    %v697 = vadd.f32 %v646, %v692
    %v698 = vld [vmem:[#allocation2 + $0xe0] sm:$0xff]
    %v699 = vld [vmem:[#allocation2 + $0xe8] sm:$0xff]
    %v700 = vld [vmem:[#allocation2 + $0xf0] sm:$0xff]
    %v701 = vld [vmem:[#allocation2 + $0xf8] sm:$0xff]
    %v702 = vld [vmem:[%s2 + $0x70] sm:$0xff]
    %v703 = vld [vmem:[%s2 + $0x78] sm:$0xff]
    %v705 = vsel %vm312, %v698, 0
    %v708 = vsel %vm312, %v699, 0
    %v711 = vsel %vm312, %v700, 0
    %v714 = vsel %vm312, %v701, 0
    %716 = vmatpush.msra.mxu0 0.0
    %717 = vmatpush.msra.mxu0 0.0
    %718 = vmatpush.msra.mxu0 0.0
    %719 = vmatpush.msra.mxu0 0.0
    %720 = vmatpush.msra.mxu0 0.0
    %721 = vmatpush.msra.mxu0 0.0
    %722 = vmatpush.msra.mxu0 0.0
    %723 = vmatpush.msra.mxu0 0.0
    %724 = vmatpush.msra.mxu0 0.0
    %725 = vmatpush.msra.mxu0 0.0
    %726 = vmatpush.msra.mxu0 0.0
    %727 = vmatpush.msra.mxu0 0.0
    %728 = vmatpush.msra.mxu0 0.0
    %729 = vmatpush.msra.mxu0 0.0
    %730 = vmatpush.msra.mxu0 %v703
    %731 = vmatpush.msra.mxu0 %v702
    %732 = vmatmul.f32.gmra.mxu0 %v705
    %v733 = vpop.f32.mrf.mxu0
    %v734 = vadd.f32 0.0, %v733
    %735 = vmatmul.f32.gmra.mxu0 %v708
    %v736 = vpop.f32.mrf.mxu0
    %v737 = vadd.f32 0.0, %v736
    %738 = vmatmul.f32.gmra.mxu0 %v711
    %v739 = vpop.f32.mrf.mxu0
    %v740 = vadd.f32 0.0, %v739
    %741 = vmatmul.f32.gmra.mxu0 %v714
    %v742 = vpop.f32.mrf.mxu0
    %v743 = vadd.f32 0.0, %v742
    %744 = vdwg.mxu0
    %v745 = vadd.f32 %v694, %v734
    %v746 = vadd.f32 %v695, %v737
    %v747 = vadd.f32 %v696, %v740
    %v748 = vadd.f32 %v697, %v743
    %v749 = vld [vmem:[#allocation2 + $0x100] sm:$0xff]
    %v750 = vld [vmem:[#allocation2 + $0x108] sm:$0xff]
    %v751 = vld [vmem:[#allocation2 + $0x110] sm:$0xff]
    %v752 = vld [vmem:[#allocation2 + $0x118] sm:$0xff]
    %v753 = vld [vmem:[%s2 + $0x80] sm:$0xff]
    %v754 = vld [vmem:[%s2 + $0x88] sm:$0xff]
    %v756 = vsel %vm312, %v749, 0
    %v759 = vsel %vm312, %v750, 0
    %v762 = vsel %vm312, %v751, 0
    %v765 = vsel %vm312, %v752, 0
    %767 = vmatpush.msra.mxu0 0.0
    %768 = vmatpush.msra.mxu0 0.0
    %769 = vmatpush.msra.mxu0 0.0
    %770 = vmatpush.msra.mxu0 0.0
    %771 = vmatpush.msra.mxu0 0.0
    %772 = vmatpush.msra.mxu0 0.0
    %773 = vmatpush.msra.mxu0 0.0
    %774 = vmatpush.msra.mxu0 0.0
    %775 = vmatpush.msra.mxu0 0.0
    %776 = vmatpush.msra.mxu0 0.0
    %777 = vmatpush.msra.mxu0 0.0
    %778 = vmatpush.msra.mxu0 0.0
    %779 = vmatpush.msra.mxu0 0.0
    %780 = vmatpush.msra.mxu0 0.0
    %781 = vmatpush.msra.mxu0 %v754
    %782 = vmatpush.msra.mxu0 %v753
    %783 = vmatmul.f32.gmra.mxu0 %v756
    %v784 = vpop.f32.mrf.mxu0
    %v785 = vadd.f32 0.0, %v784
    %786 = vmatmul.f32.gmra.mxu0 %v759
    %v787 = vpop.f32.mrf.mxu0
    %v788 = vadd.f32 0.0, %v787
    %789 = vmatmul.f32.gmra.mxu0 %v762
    %v790 = vpop.f32.mrf.mxu0
    %v791 = vadd.f32 0.0, %v790
    %792 = vmatmul.f32.gmra.mxu0 %v765
    %v793 = vpop.f32.mrf.mxu0
    %v794 = vadd.f32 0.0, %v793
    %795 = vdwg.mxu0
    %v796 = vadd.f32 %v745, %v785
    %v797 = vadd.f32 %v746, %v788
    %v798 = vadd.f32 %v747, %v791
    %v799 = vadd.f32 %v748, %v794
    %vm800 = vcmp.ge.f32.partialorder %v796, 0.0
    %vm801 = vcmp.ge.f32.partialorder %v797, 0.0
    %vm802 = vcmp.ge.f32.partialorder %v798, 0.0
    %vm803 = vcmp.ge.f32.partialorder %v799, 0.0
    %v804 = vmul.f32 %v796, 0.01
    %v805 = vmul.f32 %v797, 0.01
    %v806 = vmul.f32 %v798, 0.01
    %v807 = vmul.f32 %v799, 0.01
    %v808 = vsel %vm800, %v796, %v804
    %v809 = vsel %vm801, %v797, %v805
    %v810 = vsel %vm802, %v798, %v806
    %v811 = vsel %vm803, %v799, %v807
    %vm812 = vcmask 261120
    %813 = vst.msk [vmem:[#allocation3] sm:$0xff] %vm812, %v808
    %814 = vst.msk [vmem:[#allocation3 + $0x8] sm:$0xff] %vm812, %v809
    %815 = vst.msk [vmem:[#allocation3 + $0x10] sm:$0xff] %vm812, %v810
    %816 = vst.msk [vmem:[#allocation3 + $0x18] sm:$0xff] %vm812, %v811
    %v817 = vld [vmem:[#allocation3] sm:$0x3]
    %v818 = vld [vmem:[%s3] sm:$0xff]
    %v819 = vld [vmem:[%s3 + $0x8] sm:$0xff]
    %v820 = vld [vmem:[%s3 + $0x10] sm:$0xff]
    %v821 = vld [vmem:[%s3 + $0x18] sm:$0xff]
    %v822 = vld [vmem:[#allocation3 + $0x2] sm:$0x3]
    %v823 = vld [vmem:[%s3 + $0x20] sm:$0xff]
    %v824 = vld [vmem:[%s3 + $0x28] sm:$0xff]
    %v825 = vld [vmem:[%s3 + $0x30] sm:$0xff]
    %v826 = vld [vmem:[%s3 + $0x38] sm:$0xff]
    %v828 = vsel %vm812, %v822, 0
    %830 = vmatpush.msra.mxu0 0.0
    %831 = vmatpush.msra.mxu0 0.0
    %832 = vmatpush.msra.mxu0 0.0
    %833 = vmatpush.msra.mxu0 0.0
    %834 = vmatpush.msra.mxu0 0.0
    %835 = vmatpush.msra.mxu0 0.0
    %836 = vmatpush.msra.mxu0 0.0
    %837 = vmatpush.msra.mxu0 0.0
    %838 = vmatpush.msra.mxu0 0.0
    %839 = vmatpush.msra.mxu0 0.0
    %840 = vmatpush.msra.mxu0 0.0
    %841 = vmatpush.msra.mxu0 0.0
    %842 = vmatpush.msra.mxu0 %v826
    %843 = vmatpush.msra.mxu0 %v825
    %844 = vmatpush.msra.mxu0 %v824
    %845 = vmatpush.msra.mxu0 %v823
    %846 = vmatmul.f32.gmra.mxu0 %v828
    %v847 = vpop.f32.mrf.mxu0
    %v848 = vadd.f32 0.0, %v847
    %849 = vdwg.mxu0
    %v851 = vsel %vm812, %v817, 0
    %853 = vmatpush.msra.mxu0 0.0
    %854 = vmatpush.msra.mxu0 0.0
    %855 = vmatpush.msra.mxu0 0.0
    %856 = vmatpush.msra.mxu0 0.0
    %857 = vmatpush.msra.mxu0 0.0
    %858 = vmatpush.msra.mxu0 0.0
    %859 = vmatpush.msra.mxu0 0.0
    %860 = vmatpush.msra.mxu0 0.0
    %861 = vmatpush.msra.mxu0 0.0
    %862 = vmatpush.msra.mxu0 0.0
    %863 = vmatpush.msra.mxu0 0.0
    %864 = vmatpush.msra.mxu0 0.0
    %865 = vmatpush.msra.mxu0 %v821
    %866 = vmatpush.msra.mxu0 %v820
    %867 = vmatpush.msra.mxu0 %v819
    %868 = vmatpush.msra.mxu0 %v818
    %869 = vmatmul.f32.gmra.mxu0 %v851
    %v870 = vpop.f32.mrf.mxu0
    %v871 = vadd.f32 %v848, %v870
    %872 = vdwg.mxu0
    %v873 = vld [vmem:[#allocation3 + $0x4] sm:$0x3]
    %v874 = vld [vmem:[%s3 + $0x40] sm:$0xff]
    %v875 = vld [vmem:[%s3 + $0x48] sm:$0xff]
    %v876 = vld [vmem:[%s3 + $0x50] sm:$0xff]
    %v877 = vld [vmem:[%s3 + $0x58] sm:$0xff]
    %v879 = vsel %vm812, %v873, 0
    %881 = vmatpush.msra.mxu0 0.0
    %882 = vmatpush.msra.mxu0 0.0
    %883 = vmatpush.msra.mxu0 0.0
    %884 = vmatpush.msra.mxu0 0.0
    %885 = vmatpush.msra.mxu0 0.0
    %886 = vmatpush.msra.mxu0 0.0
    %887 = vmatpush.msra.mxu0 0.0
    %888 = vmatpush.msra.mxu0 0.0
    %889 = vmatpush.msra.mxu0 0.0
    %890 = vmatpush.msra.mxu0 0.0
    %891 = vmatpush.msra.mxu0 0.0
    %892 = vmatpush.msra.mxu0 0.0
    %893 = vmatpush.msra.mxu0 %v877
    %894 = vmatpush.msra.mxu0 %v876
    %895 = vmatpush.msra.mxu0 %v875
    %896 = vmatpush.msra.mxu0 %v874
    %897 = vmatmul.f32.gmra.mxu0 %v879
    %v898 = vpop.f32.mrf.mxu0
    %v899 = vadd.f32 0.0, %v898
    %900 = vdwg.mxu0
    %v901 = vadd.f32 %v871, %v899
    %v902 = vld [vmem:[#allocation3 + $0x6] sm:$0x3]
    %v903 = vld [vmem:[%s3 + $0x60] sm:$0xff]
    %v904 = vld [vmem:[%s3 + $0x68] sm:$0xff]
    %v905 = vld [vmem:[%s3 + $0x70] sm:$0xff]
    %v906 = vld [vmem:[%s3 + $0x78] sm:$0xff]
    %v908 = vsel %vm812, %v902, 0
    %910 = vmatpush.msra.mxu0 0.0
    %911 = vmatpush.msra.mxu0 0.0
    %912 = vmatpush.msra.mxu0 0.0
    %913 = vmatpush.msra.mxu0 0.0
    %914 = vmatpush.msra.mxu0 0.0
    %915 = vmatpush.msra.mxu0 0.0
    %916 = vmatpush.msra.mxu0 0.0
    %917 = vmatpush.msra.mxu0 0.0
    %918 = vmatpush.msra.mxu0 0.0
    %919 = vmatpush.msra.mxu0 0.0
    %920 = vmatpush.msra.mxu0 0.0
    %921 = vmatpush.msra.mxu0 0.0
    %922 = vmatpush.msra.mxu0 %v906
    %923 = vmatpush.msra.mxu0 %v905
    %924 = vmatpush.msra.mxu0 %v904
    %925 = vmatpush.msra.mxu0 %v903
    %926 = vmatmul.f32.gmra.mxu0 %v908
    %v927 = vpop.f32.mrf.mxu0
    %v928 = vadd.f32 0.0, %v927
    %929 = vdwg.mxu0
    %v930 = vadd.f32 %v901, %v928
    %v931 = vld [vmem:[#allocation3 + $0x8] sm:$0x3]
    %v932 = vld [vmem:[%s3 + $0x80] sm:$0xff]
    %v933 = vld [vmem:[%s3 + $0x88] sm:$0xff]
    %v934 = vld [vmem:[%s3 + $0x90] sm:$0xff]
    %v935 = vld [vmem:[%s3 + $0x98] sm:$0xff]
    %v937 = vsel %vm812, %v931, 0
    %939 = vmatpush.msra.mxu0 0.0
    %940 = vmatpush.msra.mxu0 0.0
    %941 = vmatpush.msra.mxu0 0.0
    %942 = vmatpush.msra.mxu0 0.0
    %943 = vmatpush.msra.mxu0 0.0
    %944 = vmatpush.msra.mxu0 0.0
    %945 = vmatpush.msra.mxu0 0.0
    %946 = vmatpush.msra.mxu0 0.0
    %947 = vmatpush.msra.mxu0 0.0
    %948 = vmatpush.msra.mxu0 0.0
    %949 = vmatpush.msra.mxu0 0.0
    %950 = vmatpush.msra.mxu0 0.0
    %951 = vmatpush.msra.mxu0 %v935
    %952 = vmatpush.msra.mxu0 %v934
    %953 = vmatpush.msra.mxu0 %v933
    %954 = vmatpush.msra.mxu0 %v932
    %955 = vmatmul.f32.gmra.mxu0 %v937
    %v956 = vpop.f32.mrf.mxu0
    %v957 = vadd.f32 0.0, %v956
    %958 = vdwg.mxu0
    %v959 = vadd.f32 %v930, %v957
    %v960 = vld [vmem:[#allocation3 + $0xa] sm:$0x3]
    %v961 = vld [vmem:[%s3 + $0xa0] sm:$0xff]
    %v962 = vld [vmem:[%s3 + $0xa8] sm:$0xff]
    %v963 = vld [vmem:[%s3 + $0xb0] sm:$0xff]
    %v964 = vld [vmem:[%s3 + $0xb8] sm:$0xff]
    %v966 = vsel %vm812, %v960, 0
    %968 = vmatpush.msra.mxu0 0.0
    %969 = vmatpush.msra.mxu0 0.0
    %970 = vmatpush.msra.mxu0 0.0
    %971 = vmatpush.msra.mxu0 0.0
    %972 = vmatpush.msra.mxu0 0.0
    %973 = vmatpush.msra.mxu0 0.0
    %974 = vmatpush.msra.mxu0 0.0
    %975 = vmatpush.msra.mxu0 0.0
    %976 = vmatpush.msra.mxu0 0.0
    %977 = vmatpush.msra.mxu0 0.0
    %978 = vmatpush.msra.mxu0 0.0
    %979 = vmatpush.msra.mxu0 0.0
    %980 = vmatpush.msra.mxu0 %v964
    %981 = vmatpush.msra.mxu0 %v963
    %982 = vmatpush.msra.mxu0 %v962
    %983 = vmatpush.msra.mxu0 %v961
    %984 = vmatmul.f32.gmra.mxu0 %v966
    %v985 = vpop.f32.mrf.mxu0
    %v986 = vadd.f32 0.0, %v985
    %987 = vdwg.mxu0
    %v988 = vadd.f32 %v959, %v986
    %v989 = vld [vmem:[#allocation3 + $0xc] sm:$0x3]
    %v990 = vld [vmem:[%s3 + $0xc0] sm:$0xff]
    %v991 = vld [vmem:[%s3 + $0xc8] sm:$0xff]
    %v992 = vld [vmem:[%s3 + $0xd0] sm:$0xff]
    %v993 = vld [vmem:[%s3 + $0xd8] sm:$0xff]
    %v995 = vsel %vm812, %v989, 0
    %997 = vmatpush.msra.mxu0 0.0
    %998 = vmatpush.msra.mxu0 0.0
    %999 = vmatpush.msra.mxu0 0.0
    %1000 = vmatpush.msra.mxu0 0.0
    %1001 = vmatpush.msra.mxu0 0.0
    %1002 = vmatpush.msra.mxu0 0.0
    %1003 = vmatpush.msra.mxu0 0.0
    %1004 = vmatpush.msra.mxu0 0.0
    %1005 = vmatpush.msra.mxu0 0.0
    %1006 = vmatpush.msra.mxu0 0.0
    %1007 = vmatpush.msra.mxu0 0.0
    %1008 = vmatpush.msra.mxu0 0.0
    %1009 = vmatpush.msra.mxu0 %v993
    %1010 = vmatpush.msra.mxu0 %v992
    %1011 = vmatpush.msra.mxu0 %v991
    %1012 = vmatpush.msra.mxu0 %v990
    %1013 = vmatmul.f32.gmra.mxu0 %v995
    %v1014 = vpop.f32.mrf.mxu0
    %v1015 = vadd.f32 0.0, %v1014
    %1016 = vdwg.mxu0
    %v1017 = vadd.f32 %v988, %v1015
    %v1018 = vld [vmem:[#allocation3 + $0xe] sm:$0x3]
    %v1019 = vld [vmem:[%s3 + $0xe0] sm:$0xff]
    %v1020 = vld [vmem:[%s3 + $0xe8] sm:$0xff]
    %v1021 = vld [vmem:[%s3 + $0xf0] sm:$0xff]
    %v1022 = vld [vmem:[%s3 + $0xf8] sm:$0xff]
    %v1024 = vsel %vm812, %v1018, 0
    %1026 = vmatpush.msra.mxu0 0.0
    %1027 = vmatpush.msra.mxu0 0.0
    %1028 = vmatpush.msra.mxu0 0.0
    %1029 = vmatpush.msra.mxu0 0.0
    %1030 = vmatpush.msra.mxu0 0.0
    %1031 = vmatpush.msra.mxu0 0.0
    %1032 = vmatpush.msra.mxu0 0.0
    %1033 = vmatpush.msra.mxu0 0.0
    %1034 = vmatpush.msra.mxu0 0.0
    %1035 = vmatpush.msra.mxu0 0.0
    %1036 = vmatpush.msra.mxu0 0.0
    %1037 = vmatpush.msra.mxu0 0.0
    %1038 = vmatpush.msra.mxu0 %v1022
    %1039 = vmatpush.msra.mxu0 %v1021
    %1040 = vmatpush.msra.mxu0 %v1020
    %1041 = vmatpush.msra.mxu0 %v1019
    %1042 = vmatmul.f32.gmra.mxu0 %v1024
    %v1043 = vpop.f32.mrf.mxu0
    %v1044 = vadd.f32 0.0, %v1043
    %1045 = vdwg.mxu0
    %v1046 = vadd.f32 %v1017, %v1044
    %v1047 = vld [vmem:[#allocation3 + $0x10] sm:$0x3]
    %v1048 = vld [vmem:[%s3 + $0x100] sm:$0xff]
    %v1049 = vld [vmem:[%s3 + $0x108] sm:$0xff]
    %v1050 = vld [vmem:[%s3 + $0x110] sm:$0xff]
    %v1051 = vld [vmem:[%s3 + $0x118] sm:$0xff]
    %v1053 = vsel %vm812, %v1047, 0
    %1055 = vmatpush.msra.mxu0 0.0
    %1056 = vmatpush.msra.mxu0 0.0
    %1057 = vmatpush.msra.mxu0 0.0
    %1058 = vmatpush.msra.mxu0 0.0
    %1059 = vmatpush.msra.mxu0 0.0
    %1060 = vmatpush.msra.mxu0 0.0
    %1061 = vmatpush.msra.mxu0 0.0
    %1062 = vmatpush.msra.mxu0 0.0
    %1063 = vmatpush.msra.mxu0 0.0
    %1064 = vmatpush.msra.mxu0 0.0
    %1065 = vmatpush.msra.mxu0 0.0
    %1066 = vmatpush.msra.mxu0 0.0
    %1067 = vmatpush.msra.mxu0 %v1051
    %1068 = vmatpush.msra.mxu0 %v1050
    %1069 = vmatpush.msra.mxu0 %v1049
    %1070 = vmatpush.msra.mxu0 %v1048
    %1071 = vmatmul.f32.gmra.mxu0 %v1053
    %v1072 = vpop.f32.mrf.mxu0
    %v1073 = vadd.f32 0.0, %v1072
    %1074 = vdwg.mxu0
    %v1075 = vadd.f32 %v1046, %v1073
    %v1076 = vld [vmem:[#allocation3 + $0x12] sm:$0x3]
    %v1077 = vld [vmem:[%s3 + $0x120] sm:$0xff]
    %v1078 = vld [vmem:[%s3 + $0x128] sm:$0xff]
    %v1079 = vld [vmem:[%s3 + $0x130] sm:$0xff]
    %v1080 = vld [vmem:[%s3 + $0x138] sm:$0xff]
    %v1082 = vsel %vm812, %v1076, 0
    %1084 = vmatpush.msra.mxu0 0.0
    %1085 = vmatpush.msra.mxu0 0.0
    %1086 = vmatpush.msra.mxu0 0.0
    %1087 = vmatpush.msra.mxu0 0.0
    %1088 = vmatpush.msra.mxu0 0.0
    %1089 = vmatpush.msra.mxu0 0.0
    %1090 = vmatpush.msra.mxu0 0.0
    %1091 = vmatpush.msra.mxu0 0.0
    %1092 = vmatpush.msra.mxu0 0.0
    %1093 = vmatpush.msra.mxu0 0.0
    %1094 = vmatpush.msra.mxu0 0.0
    %1095 = vmatpush.msra.mxu0 0.0
    %1096 = vmatpush.msra.mxu0 %v1080
    %1097 = vmatpush.msra.mxu0 %v1079
    %1098 = vmatpush.msra.mxu0 %v1078
    %1099 = vmatpush.msra.mxu0 %v1077
    %1100 = vmatmul.f32.gmra.mxu0 %v1082
    %v1101 = vpop.f32.mrf.mxu0
    %v1102 = vadd.f32 0.0, %v1101
    %1103 = vdwg.mxu0
    %v1104 = vadd.f32 %v1075, %v1102
    %v1105 = vld [vmem:[#allocation3 + $0x14] sm:$0x3]
    %v1106 = vld [vmem:[%s3 + $0x140] sm:$0xff]
    %v1107 = vld [vmem:[%s3 + $0x148] sm:$0xff]
    %v1108 = vld [vmem:[%s3 + $0x150] sm:$0xff]
    %v1109 = vld [vmem:[%s3 + $0x158] sm:$0xff]
    %v1111 = vsel %vm812, %v1105, 0
    %1113 = vmatpush.msra.mxu0 0.0
    %1114 = vmatpush.msra.mxu0 0.0
    %1115 = vmatpush.msra.mxu0 0.0
    %1116 = vmatpush.msra.mxu0 0.0
    %1117 = vmatpush.msra.mxu0 0.0
    %1118 = vmatpush.msra.mxu0 0.0
    %1119 = vmatpush.msra.mxu0 0.0
    %1120 = vmatpush.msra.mxu0 0.0
    %1121 = vmatpush.msra.mxu0 0.0
    %1122 = vmatpush.msra.mxu0 0.0
    %1123 = vmatpush.msra.mxu0 0.0
    %1124 = vmatpush.msra.mxu0 0.0
    %1125 = vmatpush.msra.mxu0 %v1109
    %1126 = vmatpush.msra.mxu0 %v1108
    %1127 = vmatpush.msra.mxu0 %v1107
    %1128 = vmatpush.msra.mxu0 %v1106
    %1129 = vmatmul.f32.gmra.mxu0 %v1111
    %v1130 = vpop.f32.mrf.mxu0
    %v1131 = vadd.f32 0.0, %v1130
    %1132 = vdwg.mxu0
    %v1133 = vadd.f32 %v1104, %v1131
    %v1134 = vld [vmem:[#allocation3 + $0x16] sm:$0x3]
    %v1135 = vld [vmem:[%s3 + $0x160] sm:$0xff]
    %v1136 = vld [vmem:[%s3 + $0x168] sm:$0xff]
    %v1137 = vld [vmem:[%s3 + $0x170] sm:$0xff]
    %v1138 = vld [vmem:[%s3 + $0x178] sm:$0xff]
    %v1140 = vsel %vm812, %v1134, 0
    %1142 = vmatpush.msra.mxu0 0.0
    %1143 = vmatpush.msra.mxu0 0.0
    %1144 = vmatpush.msra.mxu0 0.0
    %1145 = vmatpush.msra.mxu0 0.0
    %1146 = vmatpush.msra.mxu0 0.0
    %1147 = vmatpush.msra.mxu0 0.0
    %1148 = vmatpush.msra.mxu0 0.0
    %1149 = vmatpush.msra.mxu0 0.0
    %1150 = vmatpush.msra.mxu0 0.0
    %1151 = vmatpush.msra.mxu0 0.0
    %1152 = vmatpush.msra.mxu0 0.0
    %1153 = vmatpush.msra.mxu0 0.0
    %1154 = vmatpush.msra.mxu0 %v1138
    %1155 = vmatpush.msra.mxu0 %v1137
    %1156 = vmatpush.msra.mxu0 %v1136
    %1157 = vmatpush.msra.mxu0 %v1135
    %1158 = vmatmul.f32.gmra.mxu0 %v1140
    %v1159 = vpop.f32.mrf.mxu0
    %v1160 = vadd.f32 0.0, %v1159
    %1161 = vdwg.mxu0
    %v1162 = vadd.f32 %v1133, %v1160
    %v1163 = vld [vmem:[#allocation3 + $0x18] sm:$0x3]
    %v1164 = vld [vmem:[%s3 + $0x180] sm:$0xff]
    %v1165 = vld [vmem:[%s3 + $0x188] sm:$0xff]
    %v1166 = vld [vmem:[%s3 + $0x190] sm:$0xff]
    %v1167 = vld [vmem:[%s3 + $0x198] sm:$0xff]
    %v1169 = vsel %vm812, %v1163, 0
    %1171 = vmatpush.msra.mxu0 0.0
    %1172 = vmatpush.msra.mxu0 0.0
    %1173 = vmatpush.msra.mxu0 0.0
    %1174 = vmatpush.msra.mxu0 0.0
    %1175 = vmatpush.msra.mxu0 0.0
    %1176 = vmatpush.msra.mxu0 0.0
    %1177 = vmatpush.msra.mxu0 0.0
    %1178 = vmatpush.msra.mxu0 0.0
    %1179 = vmatpush.msra.mxu0 0.0
    %1180 = vmatpush.msra.mxu0 0.0
    %1181 = vmatpush.msra.mxu0 0.0
    %1182 = vmatpush.msra.mxu0 0.0
    %1183 = vmatpush.msra.mxu0 %v1167
    %1184 = vmatpush.msra.mxu0 %v1166
    %1185 = vmatpush.msra.mxu0 %v1165
    %1186 = vmatpush.msra.mxu0 %v1164
    %1187 = vmatmul.f32.gmra.mxu0 %v1169
    %v1188 = vpop.f32.mrf.mxu0
    %v1189 = vadd.f32 0.0, %v1188
    %1190 = vdwg.mxu0
    %v1191 = vadd.f32 %v1162, %v1189
    %v1192 = vld [vmem:[#allocation3 + $0x1a] sm:$0x3]
    %v1193 = vld [vmem:[%s3 + $0x1a0] sm:$0xff]
    %v1194 = vld [vmem:[%s3 + $0x1a8] sm:$0xff]
    %v1195 = vld [vmem:[%s3 + $0x1b0] sm:$0xff]
    %v1196 = vld [vmem:[%s3 + $0x1b8] sm:$0xff]
    %v1198 = vsel %vm812, %v1192, 0
    %1200 = vmatpush.msra.mxu0 0.0
    %1201 = vmatpush.msra.mxu0 0.0
    %1202 = vmatpush.msra.mxu0 0.0
    %1203 = vmatpush.msra.mxu0 0.0
    %1204 = vmatpush.msra.mxu0 0.0
    %1205 = vmatpush.msra.mxu0 0.0
    %1206 = vmatpush.msra.mxu0 0.0
    %1207 = vmatpush.msra.mxu0 0.0
    %1208 = vmatpush.msra.mxu0 0.0
    %1209 = vmatpush.msra.mxu0 0.0
    %1210 = vmatpush.msra.mxu0 0.0
    %1211 = vmatpush.msra.mxu0 0.0
    %1212 = vmatpush.msra.mxu0 %v1196
    %1213 = vmatpush.msra.mxu0 %v1195
    %1214 = vmatpush.msra.mxu0 %v1194
    %1215 = vmatpush.msra.mxu0 %v1193
    %1216 = vmatmul.f32.gmra.mxu0 %v1198
    %v1217 = vpop.f32.mrf.mxu0
    %v1218 = vadd.f32 0.0, %v1217
    %1219 = vdwg.mxu0
    %v1220 = vadd.f32 %v1191, %v1218
    %v1221 = vld [vmem:[#allocation3 + $0x1c] sm:$0x3]
    %v1222 = vld [vmem:[%s3 + $0x1c0] sm:$0xff]
    %v1223 = vld [vmem:[%s3 + $0x1c8] sm:$0xff]
    %v1224 = vld [vmem:[%s3 + $0x1d0] sm:$0xff]
    %v1225 = vld [vmem:[%s3 + $0x1d8] sm:$0xff]
    %v1227 = vsel %vm812, %v1221, 0
    %1229 = vmatpush.msra.mxu0 0.0
    %1230 = vmatpush.msra.mxu0 0.0
    %1231 = vmatpush.msra.mxu0 0.0
    %1232 = vmatpush.msra.mxu0 0.0
    %1233 = vmatpush.msra.mxu0 0.0
    %1234 = vmatpush.msra.mxu0 0.0
    %1235 = vmatpush.msra.mxu0 0.0
    %1236 = vmatpush.msra.mxu0 0.0
    %1237 = vmatpush.msra.mxu0 0.0
    %1238 = vmatpush.msra.mxu0 0.0
    %1239 = vmatpush.msra.mxu0 0.0
    %1240 = vmatpush.msra.mxu0 0.0
    %1241 = vmatpush.msra.mxu0 %v1225
    %1242 = vmatpush.msra.mxu0 %v1224
    %1243 = vmatpush.msra.mxu0 %v1223
    %1244 = vmatpush.msra.mxu0 %v1222
    %1245 = vmatmul.f32.gmra.mxu0 %v1227
    %v1246 = vpop.f32.mrf.mxu0
    %v1247 = vadd.f32 0.0, %v1246
    %1248 = vdwg.mxu0
    %v1249 = vadd.f32 %v1220, %v1247
    %v1250 = vld [vmem:[#allocation3 + $0x1e] sm:$0x3]
    %v1251 = vld [vmem:[%s3 + $0x1e0] sm:$0xff]
    %v1252 = vld [vmem:[%s3 + $0x1e8] sm:$0xff]
    %v1253 = vld [vmem:[%s3 + $0x1f0] sm:$0xff]
    %v1254 = vld [vmem:[%s3 + $0x1f8] sm:$0xff]
    %v1256 = vsel %vm812, %v1250, 0
    %1258 = vmatpush.msra.mxu0 0.0
    %1259 = vmatpush.msra.mxu0 0.0
    %1260 = vmatpush.msra.mxu0 0.0
    %1261 = vmatpush.msra.mxu0 0.0
    %1262 = vmatpush.msra.mxu0 0.0
    %1263 = vmatpush.msra.mxu0 0.0
    %1264 = vmatpush.msra.mxu0 0.0
    %1265 = vmatpush.msra.mxu0 0.0
    %1266 = vmatpush.msra.mxu0 0.0
    %1267 = vmatpush.msra.mxu0 0.0
    %1268 = vmatpush.msra.mxu0 0.0
    %1269 = vmatpush.msra.mxu0 0.0
    %1270 = vmatpush.msra.mxu0 %v1254
    %1271 = vmatpush.msra.mxu0 %v1253
    %1272 = vmatpush.msra.mxu0 %v1252
    %1273 = vmatpush.msra.mxu0 %v1251
    %1274 = vmatmul.f32.gmra.mxu0 %v1256
    %v1275 = vpop.f32.mrf.mxu0
    %v1276 = vadd.f32 0.0, %v1275
    %1277 = vdwg.mxu0
    %v1278 = vadd.f32 %v1249, %v1276
    %v1279 = vld [vmem:[%s4] sm:$0x1]
    %v1281 = vperm.slane %v1279, 0
    %v1283 = vadd.f32 %v1278, %v1281
    %vm1284 = vcmp.ge.f32.partialorder %v1283, 0.0
    %v1285 = vmul.f32 %v1283, 0.01
    %v1286 = vsel %vm1284, %v1283, %v1285
    %v1287 = vld [vmem:[%s5] sm:$0xff]
    %v1288 = vld [vmem:[%s5 + $0x8] sm:$0xff]
    %v1289 = vld [vmem:[%s5 + $0x10] sm:$0xff]
    %v1290 = vld [vmem:[%s5 + $0x18] sm:$0xff]
    %v1291 = vld [vmem:[%s5 + $0x20] sm:$0xff]
    %v1292 = vld [vmem:[%s5 + $0x28] sm:$0xff]
    %v1293 = vld [vmem:[%s5 + $0x30] sm:$0xff]
    %v1294 = vld [vmem:[%s5 + $0x38] sm:$0xff]
    %v1295 = vld [vmem:[%s6] sm:$0x1]
    %v1297 = vperm.slane %v1295, 0
    %vm1299 = vcmask 523264
    %v1301 = vsel %vm1299, %v1286, 0
    %1303 = vmatpush.msra.mxu0 0.0
    %1304 = vmatpush.msra.mxu0 0.0
    %1305 = vmatpush.msra.mxu0 0.0
    %1306 = vmatpush.msra.mxu0 0.0
    %1307 = vmatpush.msra.mxu0 0.0
    %1308 = vmatpush.msra.mxu0 0.0
    %1309 = vmatpush.msra.mxu0 0.0
    %1310 = vmatpush.msra.mxu0 0.0
    %1311 = vmatpush.msra.mxu0 %v1294
    %1312 = vmatpush.msra.mxu0 %v1293
    %1313 = vmatpush.msra.mxu0 %v1292
    %1314 = vmatpush.msra.mxu0 %v1291
    %1315 = vmatpush.msra.mxu0 %v1290
    %1316 = vmatpush.msra.mxu0 %v1289
    %1317 = vmatpush.msra.mxu0 %v1288
    %1318 = vmatpush.msra.mxu0 %v1287
    %1319 = vmatmul.f32.gmra.mxu0 %v1301
    %v1320 = vpop.f32.mrf.mxu0
    %v1321 = vadd.f32 %v1297, %v1320
    %1322 = vdwg.mxu0
    %1323 = vst [vmem:[#allocation4] sm:$0x3] %v1321
    // Predicated region
    $region30: #{_lambda_.1} parent=1 // pred_check
      _
    $region31: #{_lambda_.1} parent=1 // pred_check_branch
      %1325 = sbr.rel (0) target = $region33
    $region32: #{_lambda_.1} parent=1 // pred_region
      %1327 = vsyncadd [#allocation5], 0
      %s1329 = sshll.u32 [#allocation4], 4
      %s1330 = int_to_ptr.vmem [resolvable:$true] %s1329
      %s1331 = sshll.u32 %s7, 4
      %s1332 = int_to_ptr.hbm [resolvable:$true] %s1331
      %1334 = dma.vmem_to_hbm [thread:$0]  %s1330, 32, %s1332, [#allocation5]
    $region33: #{_lambda_.1} parent=1 // pred_fallthru
      _
    // Predicated region
    $region34: #{_lambda_.1} parent=1 // pred_check
      _
    $region35: #{_lambda_.1} parent=1 // pred_check_branch
      %1336 = sbr.rel (0) target = $region37
    $region36: #{_lambda_.1} parent=1 // pred_region
      %1338 = dma.done [#allocation5], 32
    $region37: #{_lambda_.1} parent=1 // pred_fallthru
      _
    %1339 = vsyncpa [#allocation5], 1

</llo_original>
